<compile_context>
chip_gen: v5e
topology: v5e:2x2
jax: 0.10.0
libtpu: 0.0.40
codegen_flags: <defaults>
</compile_context>

<pallas_src>
import jax
import jax.numpy as jnp
from jax.experimental import pallas as pl
from jax.experimental.pallas import tpu as pltpu

# ---------------- problem sizes (small, consistent with the module) ----------
BS = 2            # logical batch
BSP = 8           # batch padded to one sublane group
HS = 32           # params.VB_num_units
V_DIM = 12        # visual part of VB_input_dim
B_DIM = 8         # params.B_input_dim
IN_DIM = V_DIM + B_DIM   # params.VB_input_dim
NUM_LAYERS = 2    # params.VB_num_layers
LENGTH = 9        # decode length -> T = LENGTH - 1 steps
T = LENGTH - 1
FORGET_BIAS = 0.8
G4 = 4 * HS                  # 128 gate lanes per layer
REC_IN = B_DIM + 2 * HS      # 72  : [cur_b | h0 | h1]
REC_OUT = 2 * G4             # 256 : [layer-0 gates | layer-1 h-part]

# packed weight-slab row offsets (all starts sublane-aligned where it matters)
_R_WREC = 0                  # 0:72    fused block-diagonal recurrent weight
_R_W1X = 72                  # 72:104  layer-1 input (h0_new) projection
_R_W0V = 104                 # 104:116 layer-0 visual projection
_R_LW = 120                  # 120:152 output linear
_WTS_ROWS = 152


# ---------------------------- Pallas kernel ---------------------------------
def decoder_kernel(v2d_ref, wts_ref, vecs_ref, state_ref, y_ref):
    # ---- loop-invariant loads / broadcasts, done exactly once ----
    w_rec = wts_ref[_R_WREC:_R_WREC + REC_IN, :]           # (72, 256)
    w1x = wts_ref[_R_W1X:_R_W1X + HS, 0:G4]                # (32, 128)
    w0v = wts_ref[_R_W0V:_R_W0V + V_DIM, 0:G4]             # (12, 128)
    lw = wts_ref[_R_LW:_R_LW + HS, 0:B_DIM]                # (32, 8)

    bias0 = vecs_ref[0:1, 0:G4]                            # forget-bias folded
    bias1 = jnp.broadcast_to(vecs_ref[1:2, 0:G4], (BSP, G4))
    p0if = jnp.broadcast_to(vecs_ref[2:3, 0:2 * HS], (BSP, 2 * HS))
    p0o = jnp.broadcast_to(vecs_ref[3:4, 0:HS], (BSP, HS))
    p1if = jnp.broadcast_to(vecs_ref[4:5, 0:2 * HS], (BSP, 2 * HS))
    p1o = jnp.broadcast_to(vecs_ref[5:6, 0:HS], (BSP, HS))
    lb = jnp.broadcast_to(vecs_ref[6:7, 0:B_DIM], (BSP, B_DIM))

    # Teacher-forced visual projection for ALL timesteps in one MXU call
    # (layer-0 bias, incl. forget bias, folded in): (T*BSP,12)@(12,128).
    vproj = (jnp.dot(v2d_ref[...], w0v, preferred_element_type=jnp.float32)
             + jnp.broadcast_to(bias0, (T * BSP, G4)))

    def peephole_cell(gates, c, p_if, p_o):
        # gate columns are permuted to [i | f | j | o]; FORGET_BIAS is already
        # folded into the f-gate bias -> one sigmoid over the contiguous i|f slice.
        c2 = jnp.concatenate([c, c], axis=1)                       # (BSP, 2*HS)
        s_if = jax.nn.sigmoid(gates[:, 0:2 * HS] + c2 * p_if)      # one EUP push
        c_new = (s_if[:, HS:2 * HS] * c
                 + s_if[:, 0:HS] * jnp.tanh(gates[:, 2 * HS:3 * HS]))
        h_new = jax.nn.sigmoid(gates[:, 3 * HS:4 * HS] + c_new * p_o) * jnp.tanh(c_new)
        return c_new, h_new

    # Initial recurrent state: lhs = [b_in | h0 | h1], plus cell states c0/c1.
    lhs = state_ref[:, 0:REC_IN]                            # (BSP, 72)
    c0 = state_ref[:, REC_IN:REC_IN + HS]                   # (BSP, 32)
    c1 = state_ref[:, REC_IN + HS:REC_IN + 2 * HS]          # (BSP, 32)

    outs = []
    # Statically unrolled recurrence (T is small); state lives in vregs.
    for t in range(T):
        # ONE fused block-diagonal recurrent dot:
        #   cols 0:128   = cur_b @ w0b + h0 @ w0h   (layer-0 recurrent part)
        #   cols 128:256 = h1 @ w1h                 (layer-1 h part)
        rec = jnp.dot(lhs, w_rec, preferred_element_type=jnp.float32)

        # ---- layer 0 ----
        gates0 = vproj[t * BSP:(t + 1) * BSP, :] + rec[:, 0:G4]
        c0_new, h0_new = peephole_cell(gates0, c0, p0if, p0o)

        # ---- layer 1 ----
        gates1 = (jnp.dot(h0_new, w1x, preferred_element_type=jnp.float32)
                  + rec[:, G4:REC_OUT] + bias1)
        c1_new, h1_new = peephole_cell(gates1, c1, p1if, p1o)

        # ---- output head + feedback ----
        out = jnp.tanh(jnp.dot(h1_new, lw, preferred_element_type=jnp.float32) + lb)
        outs.append(out)

        # Decoder stores (h, c) but PeepholeLSTM re-reads as (c, h): swap.
        lhs = jnp.concatenate([out, c0_new, c1_new], axis=1)
        c0, c1 = h0_new, h1_new

    # Single lane-contiguous store, off the recurrence's serial path.
    y_ref[...] = jnp.concatenate(outs, axis=0)              # (T*BSP, B_DIM)


# ------------------------------- wrapper -------------------------------------
def decoder_forward(v_seq, b_in, init_state, params):
    """v_seq: (T, BS, V_DIM); b_in: (BS, B_DIM); init_state: (L, 2, BS, HS)."""
    (w0, bias0, peep0), (w1, bias1, peep1) = params["lstm"]
    lw, lb = params["linear"]
    f32 = jnp.float32

    # --- gate-column permutation [i|j|f|o] -> [i|f|j|o] + forget-bias fold ---
    perm = jnp.concatenate([jnp.arange(0, HS), jnp.arange(2 * HS, 3 * HS),
                            jnp.arange(HS, 2 * HS), jnp.arange(3 * HS, 4 * HS)])
    w0p = w0[:, perm]
    w1p = w1[:, perm]
    fb = jnp.zeros((1, G4), f32).at[:, HS:2 * HS].set(FORGET_BIAS)
    bias0p = bias0[:, perm] + fb
    bias1p = bias1[:, perm] + fb

    w0v = w0p[:V_DIM]            # visual part of layer-0 input projection
    w0b = w0p[V_DIM:IN_DIM]      # B-feedback part
    w0h = w0p[IN_DIM:]           # layer-0 hidden part
    w1x = w1p[:HS]               # layer-1 input (h0) part
    w1h = w1p[HS:]               # layer-1 hidden part

    # --- fused block-diagonal recurrent weight (trace-time, free) ---
    w_rec = jnp.zeros((REC_IN, REC_OUT), f32)
    w_rec = w_rec.at[0:B_DIM, 0:G4].set(w0b)
    w_rec = w_rec.at[B_DIM:B_DIM + HS, 0:G4].set(w0h)
    w_rec = w_rec.at[B_DIM + HS:REC_IN, G4:REC_OUT].set(w1h)

    # --- pack weights into one slab (one DMA instead of many) ---
    wts = jnp.zeros((_WTS_ROWS, REC_OUT), f32)
    wts = wts.at[_R_WREC:_R_WREC + REC_IN, :].set(w_rec)
    wts = wts.at[_R_W1X:_R_W1X + HS, 0:G4].set(w1x)
    wts = wts.at[_R_W0V:_R_W0V + V_DIM, 0:G4].set(w0v)
    wts = wts.at[_R_LW:_R_LW + HS, 0:B_DIM].set(lw)

    # --- pack biases / peepholes / lb into one small slab ---
    vecs = jnp.zeros((7, G4), f32)
    vecs = vecs.at[0, :].set(bias0p[0])
    vecs = vecs.at[1, :].set(bias1p[0])
    vecs = vecs.at[2, 0:HS].set(peep0[0])
    vecs = vecs.at[2, HS:2 * HS].set(peep0[1])
    vecs = vecs.at[3, 0:HS].set(peep0[2])
    vecs = vecs.at[4, 0:HS].set(peep1[0])
    vecs = vecs.at[4, HS:2 * HS].set(peep1[1])
    vecs = vecs.at[5, 0:HS].set(peep1[2])
    vecs = vecs.at[6, 0:B_DIM].set(lb[0])

    # --- batch-padded state slab: [b_in | h0 | h1 | c0 | c1] (rows 2:8 zero) ---
    pad_b = lambda x: jnp.pad(x, ((0, BSP - BS), (0, 0)))
    state = jnp.zeros((BSP, REC_IN + 2 * HS), f32)
    state = state.at[:, 0:B_DIM].set(pad_b(b_in))
    state = state.at[:, B_DIM:B_DIM + HS].set(pad_b(init_state[0, 1]))
    state = state.at[:, B_DIM + HS:REC_IN].set(pad_b(init_state[1, 1]))
    state = state.at[:, REC_IN:REC_IN + HS].set(pad_b(init_state[0, 0]))
    state = state.at[:, REC_IN + HS:].set(pad_b(init_state[1, 0]))

    # --- batch-padded teacher-forced visual sequence, flattened for one dot ---
    v_pad = jnp.pad(v_seq, ((0, 0), (0, BSP - BS), (0, 0)))
    v2d = v_pad.reshape(T * BSP, V_DIM)

    inputs = (v2d, wts, vecs, state)
    full = lambda shape: pl.BlockSpec(shape, lambda i: (0,) * len(shape))
    in_specs = [full(x.shape) for x in inputs]

    cost = pl.CostEstimate(
        flops=2 * T * BSP * V_DIM * G4
              + T * (2 * BSP * REC_IN * REC_OUT + 2 * BSP * HS * G4 + 2 * BSP * HS * B_DIM),
        transcendentals=T * (2 * BSP * (2 * HS + 3 * HS) + BSP * B_DIM),
        bytes_accessed=4 * (v2d.size + wts.size + vecs.size + state.size + T * BSP * B_DIM),
    )

    y_flat = pl.pallas_call(
        decoder_kernel,
        out_shape=jax.ShapeDtypeStruct((T * BSP, B_DIM), f32),
        grid=(1,),                       # whole recurrence in one grid step
        in_specs=in_specs,
        out_specs=full((T * BSP, B_DIM)),
        compiler_params=pltpu.CompilerParams(
            dimension_semantics=("arbitrary",)),
        cost_estimate=cost,
    )(*inputs)

    # drop batch padding
    return y_flat.reshape(T, BSP, B_DIM)[:, :BS, :]


# ------------------------ pure-JAX reference --------------------------------
def decoder_reference(v_seq, b_in, init_state, params):
    lw, lb = params["linear"]
    c = [init_state[j, 0] for j in range(NUM_LAYERS)]
    h = [init_state[j, 1] for j in range(NUM_LAYERS)]
    cur_b = b_in
    ys = []
    for t in range(T):
        x = jnp.concatenate([v_seq[t], cur_b], axis=1)
        for j, (W, bias, peep) in enumerate(params["lstm"]):
            gates = jnp.concatenate([x, h[j]], axis=1) @ W + bias
            i_t, j_t, f_t, o_t = (gates[:, :HS], gates[:, HS:2 * HS],
                                  gates[:, 2 * HS:3 * HS], gates[:, 3 * HS:])
            pi, pf, po = peep[0:1], peep[1:2], peep[2:3]
            c_new = (jax.nn.sigmoid(f_t + FORGET_BIAS + c[j] * pf) * c[j]
                     + jax.nn.sigmoid(i_t + c[j] * pi) * jnp.tanh(j_t))
            h_new = jax.nn.sigmoid(o_t + c_new * po) * jnp.tanh(c_new)
            c[j], h[j] = h_new, c_new      # same (h,c) swap quirk
            x = h_new
        out = jnp.tanh(x @ lw + lb)
        ys.append(out)
        cur_b = out
    return jnp.stack(ys, axis=0)


# --------------------------------- main --------------------------------------
if __name__ == "__main__":
    key = jax.random.PRNGKey(0)
    ks = jax.random.split(key, 16)

    stdv = 1.0 / (HS ** 0.5)
    uni = lambda k, shape: jax.random.uniform(k, shape, jnp.float32, -stdv, stdv)

    # PeepholeLSTM layer 0: input IN_DIM, layer 1: input HS
    w0 = uni(ks[0], (IN_DIM + HS, 4 * HS))
    bias0 = uni(ks[1], (1, 4 * HS))
    peep0 = uni(ks[2], (3, HS))             # rows: peep_i, peep_f, peep_o
    w1 = uni(ks[3], (HS + HS, 4 * HS))
    bias1 = uni(ks[4], (1, 4 * HS))
    peep1 = uni(ks[5], (3, HS))
    # final linear: VB_num_units -> B_input_dim
    lw = uni(ks[6], (HS, B_DIM))
    lb = uni(ks[7], (1, B_DIM))

    params = {"lstm": ((w0, bias0, peep0), (w1, bias1, peep1)),
              "linear": (lw, lb)}

    # Inputs: V sequence (teacher-forced), B initial vector, flat initial state.
    v_seq = jax.random.normal(ks[8], (T, BS, V_DIM), jnp.float32)
    b_in = jax.random.normal(ks[9], (BS, B_DIM), jnp.float32)
    init_flat = jax.random.normal(ks[10], (BS, NUM_LAYERS * 2 * HS), jnp.float32)
    # Same reshape/permute as Decoder.forward:
    init_state = init_flat.reshape(BS, NUM_LAYERS, 2, HS).transpose(1, 2, 0, 3)

    y = decoder_forward(v_seq, b_in, init_state, params)
    y = jax.block_until_ready(y)

    y_ref = decoder_reference(v_seq, b_in, init_state, params)
    assert y.shape == (T, BS, B_DIM)
    assert jnp.allclose(y, y_ref, rtol=1e-3, atol=1e-3), float(jnp.max(jnp.abs(y - y_ref)))

    print("KERNEL_OK")
</pallas_src>

<mosaic_0001>
module attributes {stable_mosaic.version = 11 : i64} {
  func.func @decoder_kernel(%arg0: i32, %arg1: memref<64x12xf32, #tpu.memory_space<vmem>>, %arg2: memref<152x256xf32, #tpu.memory_space<vmem>>, %arg3: memref<7x128xf32, #tpu.memory_space<vmem>>, %arg4: memref<8x136xf32, #tpu.memory_space<vmem>>, %arg5: memref<64x8xf32, #tpu.memory_space<vmem>>) attributes {dimension_semantics = [#tpu.dimension_semantics<arbitrary>], iteration_bounds = array<i64: 1>, scalar_prefetch = 0 : i64, scratch_operands = 0 : i64, tpu.core_type = #tpu.core_type<tc>, window_params = [{pipeline_mode = #tpu.pipeline_mode<synchronous>, transform_indices = @transform_0, window_bounds = array<i64: 64, 12>}, {pipeline_mode = #tpu.pipeline_mode<synchronous>, transform_indices = @transform_1, window_bounds = array<i64: 152, 256>}, {pipeline_mode = #tpu.pipeline_mode<synchronous>, transform_indices = @transform_2, window_bounds = array<i64: 7, 128>}, {pipeline_mode = #tpu.pipeline_mode<synchronous>, transform_indices = @transform_3, window_bounds = array<i64: 8, 136>}, {pipeline_mode = #tpu.pipeline_mode<synchronous>, transform_indices = @transform_4, window_bounds = array<i64: 64, 8>}]} {
    %c0 = arith.constant 0 : index
    %c0_0 = arith.constant 0 : index
    %0 = vector.load %arg2[%c0, %c0_0] : memref<152x256xf32, #tpu.memory_space<vmem>>, vector<72x256xf32>
    %c72 = arith.constant 72 : index
    %c0_1 = arith.constant 0 : index
    %1 = vector.load %arg2[%c72, %c0_1] : memref<152x256xf32, #tpu.memory_space<vmem>>, vector<32x128xf32>
    %c104 = arith.constant 104 : index
    %c0_2 = arith.constant 0 : index
    %2 = vector.load %arg2[%c104, %c0_2] : memref<152x256xf32, #tpu.memory_space<vmem>>, vector<12x128xf32>
    %c120 = arith.constant 120 : index
    %c0_3 = arith.constant 0 : index
    %3 = vector.load %arg2[%c120, %c0_3] : memref<152x256xf32, #tpu.memory_space<vmem>>, vector<32x8xf32>
    %c0_4 = arith.constant 0 : index
    %c0_5 = arith.constant 0 : index
    %4 = vector.load %arg3[%c0_4, %c0_5] : memref<7x128xf32, #tpu.memory_space<vmem>>, vector<1x128xf32>
    %c1 = arith.constant 1 : index
    %c0_6 = arith.constant 0 : index
    %5 = vector.load %arg3[%c1, %c0_6] : memref<7x128xf32, #tpu.memory_space<vmem>>, vector<1x128xf32>
    %6 = vector.shape_cast %5 : vector<1x128xf32> to vector<1x128xf32>
    %7 = vector.broadcast %6 : vector<1x128xf32> to vector<8x128xf32>
    %c2 = arith.constant 2 : index
    %c0_7 = arith.constant 0 : index
    %8 = vector.load %arg3[%c2, %c0_7] : memref<7x128xf32, #tpu.memory_space<vmem>>, vector<1x64xf32>
    %9 = vector.shape_cast %8 : vector<1x64xf32> to vector<1x64xf32>
    %10 = vector.broadcast %9 : vector<1x64xf32> to vector<8x64xf32>
    %c3 = arith.constant 3 : index
    %c0_8 = arith.constant 0 : index
    %11 = vector.load %arg3[%c3, %c0_8] : memref<7x128xf32, #tpu.memory_space<vmem>>, vector<1x32xf32>
    %12 = vector.shape_cast %11 : vector<1x32xf32> to vector<1x32xf32>
    %13 = vector.broadcast %12 : vector<1x32xf32> to vector<8x32xf32>
    %c4 = arith.constant 4 : index
    %c0_9 = arith.constant 0 : index
    %14 = vector.load %arg3[%c4, %c0_9] : memref<7x128xf32, #tpu.memory_space<vmem>>, vector<1x64xf32>
    %15 = vector.shape_cast %14 : vector<1x64xf32> to vector<1x64xf32>
    %16 = vector.broadcast %15 : vector<1x64xf32> to vector<8x64xf32>
    %c5 = arith.constant 5 : index
    %c0_10 = arith.constant 0 : index
    %17 = vector.load %arg3[%c5, %c0_10] : memref<7x128xf32, #tpu.memory_space<vmem>>, vector<1x32xf32>
    %18 = vector.shape_cast %17 : vector<1x32xf32> to vector<1x32xf32>
    %19 = vector.broadcast %18 : vector<1x32xf32> to vector<8x32xf32>
    %c6 = arith.constant 6 : index
    %c0_11 = arith.constant 0 : index
    %20 = vector.load %arg3[%c6, %c0_11] : memref<7x128xf32, #tpu.memory_space<vmem>>, vector<1x8xf32>
    %21 = vector.shape_cast %20 : vector<1x8xf32> to vector<1x8xf32>
    %22 = vector.broadcast %21 : vector<1x8xf32> to vector<8x8xf32>
    %c0_12 = arith.constant 0 : index
    %c0_13 = arith.constant 0 : index
    %23 = vector.load %arg1[%c0_12, %c0_13] : memref<64x12xf32, #tpu.memory_space<vmem>>, vector<64x12xf32>
    %cst = arith.constant dense<0.000000e+00> : vector<64x128xf32>
    %24 = tpu.matmul %23, %2, %cst {dimension_numbers = #tpu.dot_dimension_numbers<[1], [0], [0], [1], [0, 0, 1, 1], [], []>} : vector<64x12xf32>, vector<12x128xf32>, vector<64x128xf32> -> vector<64x128xf32>
    %25 = vector.shape_cast %4 : vector<1x128xf32> to vector<1x128xf32>
    %26 = vector.broadcast %25 : vector<1x128xf32> to vector<64x128xf32>
    %27 = arith.addf %24, %26 : vector<64x128xf32>
    %c0_14 = arith.constant 0 : index
    %c0_15 = arith.constant 0 : index
    %28 = vector.load %arg4[%c0_14, %c0_15] : memref<8x136xf32, #tpu.memory_space<vmem>>, vector<8x72xf32>
    %c0_16 = arith.constant 0 : index
    %c72_17 = arith.constant 72 : index
    %29 = vector.load %arg4[%c0_16, %c72_17] : memref<8x136xf32, #tpu.memory_space<vmem>>, vector<8x32xf32>
    %c0_18 = arith.constant 0 : index
    %c104_19 = arith.constant 104 : index
    %30 = vector.load %arg4[%c0_18, %c104_19] : memref<8x136xf32, #tpu.memory_space<vmem>>, vector<8x32xf32>
    %cst_20 = arith.constant dense<0.000000e+00> : vector<8x256xf32>
    %31 = tpu.matmul %28, %0, %cst_20 {dimension_numbers = #tpu.dot_dimension_numbers<[1], [0], [0], [1], [0, 0, 1, 1], [], []>} : vector<8x72xf32>, vector<72x256xf32>, vector<8x256xf32> -> vector<8x256xf32>
    %32 = vector.extract_strided_slice %27 {offsets = [0, 0], sizes = [8, 128], strides = [1, 1]} : vector<64x128xf32> to vector<8x128xf32>
    %33 = vector.extract_strided_slice %31 {offsets = [0, 0], sizes = [8, 128], strides = [1, 1]} : vector<8x256xf32> to vector<8x128xf32>
    %34 = arith.addf %32, %33 : vector<8x128xf32>
    %35 = tpu.concatenate %29, %29 in 1 : vector<8x32xf32>, vector<8x32xf32> -> vector<8x64xf32>
    %36 = vector.extract_strided_slice %34 {offsets = [0, 0], sizes = [8, 64], strides = [1, 1]} : vector<8x128xf32> to vector<8x64xf32>
    %37 = arith.mulf %35, %10 : vector<8x64xf32>
    %38 = arith.addf %36, %37 : vector<8x64xf32>
    %39 = arith.negf %38 : vector<8x64xf32>
    %40 = math.exp %39 : vector<8x64xf32>
    %cst_21 = arith.constant 1.000000e+00 : f32
    %41 = vector.broadcast %cst_21 : f32 to vector<8x64xf32>
    %42 = arith.addf %41, %40 : vector<8x64xf32>
    %43 = arith.divf %41, %42 : vector<8x64xf32>
    %44 = vector.extract_strided_slice %43 {offsets = [0, 32], sizes = [8, 32], strides = [1, 1]} : vector<8x64xf32> to vector<8x32xf32>
    %45 = arith.mulf %44, %29 : vector<8x32xf32>
    %46 = vector.extract_strided_slice %43 {offsets = [0, 0], sizes = [8, 32], strides = [1, 1]} : vector<8x64xf32> to vector<8x32xf32>
    %47 = vector.extract_strided_slice %34 {offsets = [0, 64], sizes = [8, 32], strides = [1, 1]} : vector<8x128xf32> to vector<8x32xf32>
    %48 = math.tanh %47 : vector<8x32xf32>
    %49 = arith.mulf %46, %48 : vector<8x32xf32>
    %50 = arith.addf %45, %49 : vector<8x32xf32>
    %51 = vector.extract_strided_slice %34 {offsets = [0, 96], sizes = [8, 32], strides = [1, 1]} : vector<8x128xf32> to vector<8x32xf32>
    %52 = arith.mulf %50, %13 : vector<8x32xf32>
    %53 = arith.addf %51, %52 : vector<8x32xf32>
    %54 = arith.negf %53 : vector<8x32xf32>
    %55 = math.exp %54 : vector<8x32xf32>
    %cst_22 = arith.constant 1.000000e+00 : f32
    %56 = vector.broadcast %cst_22 : f32 to vector<8x32xf32>
    %57 = arith.addf %56, %55 : vector<8x32xf32>
    %58 = arith.divf %56, %57 : vector<8x32xf32>
    %59 = math.tanh %50 : vector<8x32xf32>
    %60 = arith.mulf %58, %59 : vector<8x32xf32>
    %cst_23 = arith.constant dense<0.000000e+00> : vector<8x128xf32>
    %61 = tpu.matmul %60, %1, %cst_23 {dimension_numbers = #tpu.dot_dimension_numbers<[1], [0], [0], [1], [0, 0, 1, 1], [], []>} : vector<8x32xf32>, vector<32x128xf32>, vector<8x128xf32> -> vector<8x128xf32>
    %62 = vector.extract_strided_slice %31 {offsets = [0, 128], sizes = [8, 128], strides = [1, 1]} : vector<8x256xf32> to vector<8x128xf32>
    %63 = arith.addf %61, %62 : vector<8x128xf32>
    %64 = arith.addf %63, %7 : vector<8x128xf32>
    %65 = tpu.concatenate %30, %30 in 1 : vector<8x32xf32>, vector<8x32xf32> -> vector<8x64xf32>
    %66 = vector.extract_strided_slice %64 {offsets = [0, 0], sizes = [8, 64], strides = [1, 1]} : vector<8x128xf32> to vector<8x64xf32>
    %67 = arith.mulf %65, %16 : vector<8x64xf32>
    %68 = arith.addf %66, %67 : vector<8x64xf32>
    %69 = arith.negf %68 : vector<8x64xf32>
    %70 = math.exp %69 : vector<8x64xf32>
    %cst_24 = arith.constant 1.000000e+00 : f32
    %71 = vector.broadcast %cst_24 : f32 to vector<8x64xf32>
    %72 = arith.addf %71, %70 : vector<8x64xf32>
    %73 = arith.divf %71, %72 : vector<8x64xf32>
    %74 = vector.extract_strided_slice %73 {offsets = [0, 32], sizes = [8, 32], strides = [1, 1]} : vector<8x64xf32> to vector<8x32xf32>
    %75 = arith.mulf %74, %30 : vector<8x32xf32>
    %76 = vector.extract_strided_slice %73 {offsets = [0, 0], sizes = [8, 32], strides = [1, 1]} : vector<8x64xf32> to vector<8x32xf32>
    %77 = vector.extract_strided_slice %64 {offsets = [0, 64], sizes = [8, 32], strides = [1, 1]} : vector<8x128xf32> to vector<8x32xf32>
    %78 = math.tanh %77 : vector<8x32xf32>
    %79 = arith.mulf %76, %78 : vector<8x32xf32>
    %80 = arith.addf %75, %79 : vector<8x32xf32>
    %81 = vector.extract_strided_slice %64 {offsets = [0, 96], sizes = [8, 32], strides = [1, 1]} : vector<8x128xf32> to vector<8x32xf32>
    %82 = arith.mulf %80, %19 : vector<8x32xf32>
    %83 = arith.addf %81, %82 : vector<8x32xf32>
    %84 = arith.negf %83 : vector<8x32xf32>
    %85 = math.exp %84 : vector<8x32xf32>
    %cst_25 = arith.constant 1.000000e+00 : f32
    %86 = vector.broadcast %cst_25 : f32 to vector<8x32xf32>
    %87 = arith.addf %86, %85 : vector<8x32xf32>
    %88 = arith.divf %86, %87 : vector<8x32xf32>
    %89 = math.tanh %80 : vector<8x32xf32>
    %90 = arith.mulf %88, %89 : vector<8x32xf32>
    %cst_26 = arith.constant dense<0.000000e+00> : vector<8x8xf32>
    %91 = tpu.matmul %90, %3, %cst_26 {dimension_numbers = #tpu.dot_dimension_numbers<[1], [0], [0], [1], [0, 0, 1, 1], [], []>} : vector<8x32xf32>, vector<32x8xf32>, vector<8x8xf32> -> vector<8x8xf32>
    %92 = arith.addf %91, %22 : vector<8x8xf32>
    %93 = math.tanh %92 : vector<8x8xf32>
    %94 = tpu.concatenate %93, %50, %80 in 1 : vector<8x8xf32>, vector<8x32xf32>, vector<8x32xf32> -> vector<8x72xf32>
    %cst_27 = arith.constant dense<0.000000e+00> : vector<8x256xf32>
    %95 = tpu.matmul %94, %0, %cst_27 {dimension_numbers = #tpu.dot_dimension_numbers<[1], [0], [0], [1], [0, 0, 1, 1], [], []>} : vector<8x72xf32>, vector<72x256xf32>, vector<8x256xf32> -> vector<8x256xf32>
    %96 = vector.extract_strided_slice %27 {offsets = [8, 0], sizes = [8, 128], strides = [1, 1]} : vector<64x128xf32> to vector<8x128xf32>
    %97 = vector.extract_strided_slice %95 {offsets = [0, 0], sizes = [8, 128], strides = [1, 1]} : vector<8x256xf32> to vector<8x128xf32>
    %98 = arith.addf %96, %97 : vector<8x128xf32>
    %99 = tpu.concatenate %60, %60 in 1 : vector<8x32xf32>, vector<8x32xf32> -> vector<8x64xf32>
    %100 = vector.extract_strided_slice %98 {offsets = [0, 0], sizes = [8, 64], strides = [1, 1]} : vector<8x128xf32> to vector<8x64xf32>
    %101 = arith.mulf %99, %10 : vector<8x64xf32>
    %102 = arith.addf %100, %101 : vector<8x64xf32>
    %103 = arith.negf %102 : vector<8x64xf32>
    %104 = math.exp %103 : vector<8x64xf32>
    %cst_28 = arith.constant 1.000000e+00 : f32
    %105 = vector.broadcast %cst_28 : f32 to vector<8x64xf32>
    %106 = arith.addf %105, %104 : vector<8x64xf32>
    %107 = arith.divf %105, %106 : vector<8x64xf32>
    %108 = vector.extract_strided_slice %107 {offsets = [0, 32], sizes = [8, 32], strides = [1, 1]} : vector<8x64xf32> to vector<8x32xf32>
    %109 = arith.mulf %108, %60 : vector<8x32xf32>
    %110 = vector.extract_strided_slice %107 {offsets = [0, 0], sizes = [8, 32], strides = [1, 1]} : vector<8x64xf32> to vector<8x32xf32>
    %111 = vector.extract_strided_slice %98 {offsets = [0, 64], sizes = [8, 32], strides = [1, 1]} : vector<8x128xf32> to vector<8x32xf32>
    %112 = math.tanh %111 : vector<8x32xf32>
    %113 = arith.mulf %110, %112 : vector<8x32xf32>
    %114 = arith.addf %109, %113 : vector<8x32xf32>
    %115 = vector.extract_strided_slice %98 {offsets = [0, 96], sizes = [8, 32], strides = [1, 1]} : vector<8x128xf32> to vector<8x32xf32>
    %116 = arith.mulf %114, %13 : vector<8x32xf32>
    %117 = arith.addf %115, %116 : vector<8x32xf32>
    %118 = arith.negf %117 : vector<8x32xf32>
    %119 = math.exp %118 : vector<8x32xf32>
    %cst_29 = arith.constant 1.000000e+00 : f32
    %120 = vector.broadcast %cst_29 : f32 to vector<8x32xf32>
    %121 = arith.addf %120, %119 : vector<8x32xf32>
    %122 = arith.divf %120, %121 : vector<8x32xf32>
    %123 = math.tanh %114 : vector<8x32xf32>
    %124 = arith.mulf %122, %123 : vector<8x32xf32>
    %cst_30 = arith.constant dense<0.000000e+00> : vector<8x128xf32>
    %125 = tpu.matmul %124, %1, %cst_30 {dimension_numbers = #tpu.dot_dimension_numbers<[1], [0], [0], [1], [0, 0, 1, 1], [], []>} : vector<8x32xf32>, vector<32x128xf32>, vector<8x128xf32> -> vector<8x128xf32>
    %126 = vector.extract_strided_slice %95 {offsets = [0, 128], sizes = [8, 128], strides = [1, 1]} : vector<8x256xf32> to vector<8x128xf32>
    %127 = arith.addf %125, %126 : vector<8x128xf32>
    %128 = arith.addf %127, %7 : vector<8x128xf32>
    %129 = tpu.concatenate %90, %90 in 1 : vector<8x32xf32>, vector<8x32xf32> -> vector<8x64xf32>
    %130 = vector.extract_strided_slice %128 {offsets = [0, 0], sizes = [8, 64], strides = [1, 1]} : vector<8x128xf32> to vector<8x64xf32>
    %131 = arith.mulf %129, %16 : vector<8x64xf32>
    %132 = arith.addf %130, %131 : vector<8x64xf32>
    %133 = arith.negf %132 : vector<8x64xf32>
    %134 = math.exp %133 : vector<8x64xf32>
    %cst_31 = arith.constant 1.000000e+00 : f32
    %135 = vector.broadcast %cst_31 : f32 to vector<8x64xf32>
    %136 = arith.addf %135, %134 : vector<8x64xf32>
    %137 = arith.divf %135, %136 : vector<8x64xf32>
    %138 = vector.extract_strided_slice %137 {offsets = [0, 32], sizes = [8, 32], strides = [1, 1]} : vector<8x64xf32> to vector<8x32xf32>
    %139 = arith.mulf %138, %90 : vector<8x32xf32>
    %140 = vector.extract_strided_slice %137 {offsets = [0, 0], sizes = [8, 32], strides = [1, 1]} : vector<8x64xf32> to vector<8x32xf32>
    %141 = vector.extract_strided_slice %128 {offsets = [0, 64], sizes = [8, 32], strides = [1, 1]} : vector<8x128xf32> to vector<8x32xf32>
    %142 = math.tanh %141 : vector<8x32xf32>
    %143 = arith.mulf %140, %142 : vector<8x32xf32>
    %144 = arith.addf %139, %143 : vector<8x32xf32>
    %145 = vector.extract_strided_slice %128 {offsets = [0, 96], sizes = [8, 32], strides = [1, 1]} : vector<8x128xf32> to vector<8x32xf32>
    %146 = arith.mulf %144, %19 : vector<8x32xf32>
    %147 = arith.addf %145, %146 : vector<8x32xf32>
    %148 = arith.negf %147 : vector<8x32xf32>
    %149 = math.exp %148 : vector<8x32xf32>
    %cst_32 = arith.constant 1.000000e+00 : f32
    %150 = vector.broadcast %cst_32 : f32 to vector<8x32xf32>
    %151 = arith.addf %150, %149 : vector<8x32xf32>
    %152 = arith.divf %150, %151 : vector<8x32xf32>
    %153 = math.tanh %144 : vector<8x32xf32>
    %154 = arith.mulf %152, %153 : vector<8x32xf32>
    %cst_33 = arith.constant dense<0.000000e+00> : vector<8x8xf32>
    %155 = tpu.matmul %154, %3, %cst_33 {dimension_numbers = #tpu.dot_dimension_numbers<[1], [0], [0], [1], [0, 0, 1, 1], [], []>} : vector<8x32xf32>, vector<32x8xf32>, vector<8x8xf32> -> vector<8x8xf32>
    %156 = arith.addf %155, %22 : vector<8x8xf32>
    %157 = math.tanh %156 : vector<8x8xf32>
    %158 = tpu.concatenate %157, %114, %144 in 1 : vector<8x8xf32>, vector<8x32xf32>, vector<8x32xf32> -> vector<8x72xf32>
    %cst_34 = arith.constant dense<0.000000e+00> : vector<8x256xf32>
    %159 = tpu.matmul %158, %0, %cst_34 {dimension_numbers = #tpu.dot_dimension_numbers<[1], [0], [0], [1], [0, 0, 1, 1], [], []>} : vector<8x72xf32>, vector<72x256xf32>, vector<8x256xf32> -> vector<8x256xf32>
    %160 = vector.extract_strided_slice %27 {offsets = [16, 0], sizes = [8, 128], strides = [1, 1]} : vector<64x128xf32> to vector<8x128xf32>
    %161 = vector.extract_strided_slice %159 {offsets = [0, 0], sizes = [8, 128], strides = [1, 1]} : vector<8x256xf32> to vector<8x128xf32>
    %162 = arith.addf %160, %161 : vector<8x128xf32>
    %163 = tpu.concatenate %124, %124 in 1 : vector<8x32xf32>, vector<8x32xf32> -> vector<8x64xf32>
    %164 = vector.extract_strided_slice %162 {offsets = [0, 0], sizes = [8, 64], strides = [1, 1]} : vector<8x128xf32> to vector<8x64xf32>
    %165 = arith.mulf %163, %10 : vector<8x64xf32>
    %166 = arith.addf %164, %165 : vector<8x64xf32>
    %167 = arith.negf %166 : vector<8x64xf32>
    %168 = math.exp %167 : vector<8x64xf32>
    %cst_35 = arith.constant 1.000000e+00 : f32
    %169 = vector.broadcast %cst_35 : f32 to vector<8x64xf32>
    %170 = arith.addf %169, %168 : vector<8x64xf32>
    %171 = arith.divf %169, %170 : vector<8x64xf32>
    %172 = vector.extract_strided_slice %171 {offsets = [0, 32], sizes = [8, 32], strides = [1, 1]} : vector<8x64xf32> to vector<8x32xf32>
    %173 = arith.mulf %172, %124 : vector<8x32xf32>
    %174 = vector.extract_strided_slice %171 {offsets = [0, 0], sizes = [8, 32], strides = [1, 1]} : vector<8x64xf32> to vector<8x32xf32>
    %175 = vector.extract_strided_slice %162 {offsets = [0, 64], sizes = [8, 32], strides = [1, 1]} : vector<8x128xf32> to vector<8x32xf32>
    %176 = math.tanh %175 : vector<8x32xf32>
    %177 = arith.mulf %174, %176 : vector<8x32xf32>
    %178 = arith.addf %173, %177 : vector<8x32xf32>
    %179 = vector.extract_strided_slice %162 {offsets = [0, 96], sizes = [8, 32], strides = [1, 1]} : vector<8x128xf32> to vector<8x32xf32>
    %180 = arith.mulf %178, %13 : vector<8x32xf32>
    %181 = arith.addf %179, %180 : vector<8x32xf32>
    %182 = arith.negf %181 : vector<8x32xf32>
    %183 = math.exp %182 : vector<8x32xf32>
    %cst_36 = arith.constant 1.000000e+00 : f32
    %184 = vector.broadcast %cst_36 : f32 to vector<8x32xf32>
    %185 = arith.addf %184, %183 : vector<8x32xf32>
    %186 = arith.divf %184, %185 : vector<8x32xf32>
    %187 = math.tanh %178 : vector<8x32xf32>
    %188 = arith.mulf %186, %187 : vector<8x32xf32>
    %cst_37 = arith.constant dense<0.000000e+00> : vector<8x128xf32>
    %189 = tpu.matmul %188, %1, %cst_37 {dimension_numbers = #tpu.dot_dimension_numbers<[1], [0], [0], [1], [0, 0, 1, 1], [], []>} : vector<8x32xf32>, vector<32x128xf32>, vector<8x128xf32> -> vector<8x128xf32>
    %190 = vector.extract_strided_slice %159 {offsets = [0, 128], sizes = [8, 128], strides = [1, 1]} : vector<8x256xf32> to vector<8x128xf32>
    %191 = arith.addf %189, %190 : vector<8x128xf32>
    %192 = arith.addf %191, %7 : vector<8x128xf32>
    %193 = tpu.concatenate %154, %154 in 1 : vector<8x32xf32>, vector<8x32xf32> -> vector<8x64xf32>
    %194 = vector.extract_strided_slice %192 {offsets = [0, 0], sizes = [8, 64], strides = [1, 1]} : vector<8x128xf32> to vector<8x64xf32>
    %195 = arith.mulf %193, %16 : vector<8x64xf32>
    %196 = arith.addf %194, %195 : vector<8x64xf32>
    %197 = arith.negf %196 : vector<8x64xf32>
    %198 = math.exp %197 : vector<8x64xf32>
    %cst_38 = arith.constant 1.000000e+00 : f32
    %199 = vector.broadcast %cst_38 : f32 to vector<8x64xf32>
    %200 = arith.addf %199, %198 : vector<8x64xf32>
    %201 = arith.divf %199, %200 : vector<8x64xf32>
    %202 = vector.extract_strided_slice %201 {offsets = [0, 32], sizes = [8, 32], strides = [1, 1]} : vector<8x64xf32> to vector<8x32xf32>
    %203 = arith.mulf %202, %154 : vector<8x32xf32>
    %204 = vector.extract_strided_slice %201 {offsets = [0, 0], sizes = [8, 32], strides = [1, 1]} : vector<8x64xf32> to vector<8x32xf32>
    %205 = vector.extract_strided_slice %192 {offsets = [0, 64], sizes = [8, 32], strides = [1, 1]} : vector<8x128xf32> to vector<8x32xf32>
    %206 = math.tanh %205 : vector<8x32xf32>
    %207 = arith.mulf %204, %206 : vector<8x32xf32>
    %208 = arith.addf %203, %207 : vector<8x32xf32>
    %209 = vector.extract_strided_slice %192 {offsets = [0, 96], sizes = [8, 32], strides = [1, 1]} : vector<8x128xf32> to vector<8x32xf32>
    %210 = arith.mulf %208, %19 : vector<8x32xf32>
    %211 = arith.addf %209, %210 : vector<8x32xf32>
    %212 = arith.negf %211 : vector<8x32xf32>
    %213 = math.exp %212 : vector<8x32xf32>
    %cst_39 = arith.constant 1.000000e+00 : f32
    %214 = vector.broadcast %cst_39 : f32 to vector<8x32xf32>
    %215 = arith.addf %214, %213 : vector<8x32xf32>
    %216 = arith.divf %214, %215 : vector<8x32xf32>
    %217 = math.tanh %208 : vector<8x32xf32>
    %218 = arith.mulf %216, %217 : vector<8x32xf32>
    %cst_40 = arith.constant dense<0.000000e+00> : vector<8x8xf32>
    %219 = tpu.matmul %218, %3, %cst_40 {dimension_numbers = #tpu.dot_dimension_numbers<[1], [0], [0], [1], [0, 0, 1, 1], [], []>} : vector<8x32xf32>, vector<32x8xf32>, vector<8x8xf32> -> vector<8x8xf32>
    %220 = arith.addf %219, %22 : vector<8x8xf32>
    %221 = math.tanh %220 : vector<8x8xf32>
    %222 = tpu.concatenate %221, %178, %208 in 1 : vector<8x8xf32>, vector<8x32xf32>, vector<8x32xf32> -> vector<8x72xf32>
    %cst_41 = arith.constant dense<0.000000e+00> : vector<8x256xf32>
    %223 = tpu.matmul %222, %0, %cst_41 {dimension_numbers = #tpu.dot_dimension_numbers<[1], [0], [0], [1], [0, 0, 1, 1], [], []>} : vector<8x72xf32>, vector<72x256xf32>, vector<8x256xf32> -> vector<8x256xf32>
    %224 = vector.extract_strided_slice %27 {offsets = [24, 0], sizes = [8, 128], strides = [1, 1]} : vector<64x128xf32> to vector<8x128xf32>
    %225 = vector.extract_strided_slice %223 {offsets = [0, 0], sizes = [8, 128], strides = [1, 1]} : vector<8x256xf32> to vector<8x128xf32>
    %226 = arith.addf %224, %225 : vector<8x128xf32>
    %227 = tpu.concatenate %188, %188 in 1 : vector<8x32xf32>, vector<8x32xf32> -> vector<8x64xf32>
    %228 = vector.extract_strided_slice %226 {offsets = [0, 0], sizes = [8, 64], strides = [1, 1]} : vector<8x128xf32> to vector<8x64xf32>
    %229 = arith.mulf %227, %10 : vector<8x64xf32>
    %230 = arith.addf %228, %229 : vector<8x64xf32>
    %231 = arith.negf %230 : vector<8x64xf32>
    %232 = math.exp %231 : vector<8x64xf32>
    %cst_42 = arith.constant 1.000000e+00 : f32
    %233 = vector.broadcast %cst_42 : f32 to vector<8x64xf32>
    %234 = arith.addf %233, %232 : vector<8x64xf32>
    %235 = arith.divf %233, %234 : vector<8x64xf32>
    %236 = vector.extract_strided_slice %235 {offsets = [0, 32], sizes = [8, 32], strides = [1, 1]} : vector<8x64xf32> to vector<8x32xf32>
    %237 = arith.mulf %236, %188 : vector<8x32xf32>
    %238 = vector.extract_strided_slice %235 {offsets = [0, 0], sizes = [8, 32], strides = [1, 1]} : vector<8x64xf32> to vector<8x32xf32>
    %239 = vector.extract_strided_slice %226 {offsets = [0, 64], sizes = [8, 32], strides = [1, 1]} : vector<8x128xf32> to vector<8x32xf32>
    %240 = math.tanh %239 : vector<8x32xf32>
    %241 = arith.mulf %238, %240 : vector<8x32xf32>
    %242 = arith.addf %237, %241 : vector<8x32xf32>
    %243 = vector.extract_strided_slice %226 {offsets = [0, 96], sizes = [8, 32], strides = [1, 1]} : vector<8x128xf32> to vector<8x32xf32>
    %244 = arith.mulf %242, %13 : vector<8x32xf32>
    %245 = arith.addf %243, %244 : vector<8x32xf32>
    %246 = arith.negf %245 : vector<8x32xf32>
    %247 = math.exp %246 : vector<8x32xf32>
    %cst_43 = arith.constant 1.000000e+00 : f32
    %248 = vector.broadcast %cst_43 : f32 to vector<8x32xf32>
    %249 = arith.addf %248, %247 : vector<8x32xf32>
    %250 = arith.divf %248, %249 : vector<8x32xf32>
    %251 = math.tanh %242 : vector<8x32xf32>
    %252 = arith.mulf %250, %251 : vector<8x32xf32>
    %cst_44 = arith.constant dense<0.000000e+00> : vector<8x128xf32>
    %253 = tpu.matmul %252, %1, %cst_44 {dimension_numbers = #tpu.dot_dimension_numbers<[1], [0], [0], [1], [0, 0, 1, 1], [], []>} : vector<8x32xf32>, vector<32x128xf32>, vector<8x128xf32> -> vector<8x128xf32>
    %254 = vector.extract_strided_slice %223 {offsets = [0, 128], sizes = [8, 128], strides = [1, 1]} : vector<8x256xf32> to vector<8x128xf32>
    %255 = arith.addf %253, %254 : vector<8x128xf32>
    %256 = arith.addf %255, %7 : vector<8x128xf32>
    %257 = tpu.concatenate %218, %218 in 1 : vector<8x32xf32>, vector<8x32xf32> -> vector<8x64xf32>
    %258 = vector.extract_strided_slice %256 {offsets = [0, 0], sizes = [8, 64], strides = [1, 1]} : vector<8x128xf32> to vector<8x64xf32>
    %259 = arith.mulf %257, %16 : vector<8x64xf32>
    %260 = arith.addf %258, %259 : vector<8x64xf32>
    %261 = arith.negf %260 : vector<8x64xf32>
    %262 = math.exp %261 : vector<8x64xf32>
    %cst_45 = arith.constant 1.000000e+00 : f32
    %263 = vector.broadcast %cst_45 : f32 to vector<8x64xf32>
    %264 = arith.addf %263, %262 : vector<8x64xf32>
    %265 = arith.divf %263, %264 : vector<8x64xf32>
    %266 = vector.extract_strided_slice %265 {offsets = [0, 32], sizes = [8, 32], strides = [1, 1]} : vector<8x64xf32> to vector<8x32xf32>
    %267 = arith.mulf %266, %218 : vector<8x32xf32>
    %268 = vector.extract_strided_slice %265 {offsets = [0, 0], sizes = [8, 32], strides = [1, 1]} : vector<8x64xf32> to vector<8x32xf32>
    %269 = vector.extract_strided_slice %256 {offsets = [0, 64], sizes = [8, 32], strides = [1, 1]} : vector<8x128xf32> to vector<8x32xf32>
    %270 = math.tanh %269 : vector<8x32xf32>
    %271 = arith.mulf %268, %270 : vector<8x32xf32>
    %272 = arith.addf %267, %271 : vector<8x32xf32>
    %273 = vector.extract_strided_slice %256 {offsets = [0, 96], sizes = [8, 32], strides = [1, 1]} : vector<8x128xf32> to vector<8x32xf32>
    %274 = arith.mulf %272, %19 : vector<8x32xf32>
    %275 = arith.addf %273, %274 : vector<8x32xf32>
    %276 = arith.negf %275 : vector<8x32xf32>
    %277 = math.exp %276 : vector<8x32xf32>
    %cst_46 = arith.constant 1.000000e+00 : f32
    %278 = vector.broadcast %cst_46 : f32 to vector<8x32xf32>
    %279 = arith.addf %278, %277 : vector<8x32xf32>
    %280 = arith.divf %278, %279 : vector<8x32xf32>
    %281 = math.tanh %272 : vector<8x32xf32>
    %282 = arith.mulf %280, %281 : vector<8x32xf32>
    %cst_47 = arith.constant dense<0.000000e+00> : vector<8x8xf32>
    %283 = tpu.matmul %282, %3, %cst_47 {dimension_numbers = #tpu.dot_dimension_numbers<[1], [0], [0], [1], [0, 0, 1, 1], [], []>} : vector<8x32xf32>, vector<32x8xf32>, vector<8x8xf32> -> vector<8x8xf32>
    %284 = arith.addf %283, %22 : vector<8x8xf32>
    %285 = math.tanh %284 : vector<8x8xf32>
    %286 = tpu.concatenate %285, %242, %272 in 1 : vector<8x8xf32>, vector<8x32xf32>, vector<8x32xf32> -> vector<8x72xf32>
    %cst_48 = arith.constant dense<0.000000e+00> : vector<8x256xf32>
    %287 = tpu.matmul %286, %0, %cst_48 {dimension_numbers = #tpu.dot_dimension_numbers<[1], [0], [0], [1], [0, 0, 1, 1], [], []>} : vector<8x72xf32>, vector<72x256xf32>, vector<8x256xf32> -> vector<8x256xf32>
    %288 = vector.extract_strided_slice %27 {offsets = [32, 0], sizes = [8, 128], strides = [1, 1]} : vector<64x128xf32> to vector<8x128xf32>
    %289 = vector.extract_strided_slice %287 {offsets = [0, 0], sizes = [8, 128], strides = [1, 1]} : vector<8x256xf32> to vector<8x128xf32>
    %290 = arith.addf %288, %289 : vector<8x128xf32>
    %291 = tpu.concatenate %252, %252 in 1 : vector<8x32xf32>, vector<8x32xf32> -> vector<8x64xf32>
    %292 = vector.extract_strided_slice %290 {offsets = [0, 0], sizes = [8, 64], strides = [1, 1]} : vector<8x128xf32> to vector<8x64xf32>
    %293 = arith.mulf %291, %10 : vector<8x64xf32>
    %294 = arith.addf %292, %293 : vector<8x64xf32>
    %295 = arith.negf %294 : vector<8x64xf32>
    %296 = math.exp %295 : vector<8x64xf32>
    %cst_49 = arith.constant 1.000000e+00 : f32
    %297 = vector.broadcast %cst_49 : f32 to vector<8x64xf32>
    %298 = arith.addf %297, %296 : vector<8x64xf32>
    %299 = arith.divf %297, %298 : vector<8x64xf32>
    %300 = vector.extract_strided_slice %299 {offsets = [0, 32], sizes = [8, 32], strides = [1, 1]} : vector<8x64xf32> to vector<8x32xf32>
    %301 = arith.mulf %300, %252 : vector<8x32xf32>
    %302 = vector.extract_strided_slice %299 {offsets = [0, 0], sizes = [8, 32], strides = [1, 1]} : vector<8x64xf32> to vector<8x32xf32>
    %303 = vector.extract_strided_slice %290 {offsets = [0, 64], sizes = [8, 32], strides = [1, 1]} : vector<8x128xf32> to vector<8x32xf32>
    %304 = math.tanh %303 : vector<8x32xf32>
    %305 = arith.mulf %302, %304 : vector<8x32xf32>
    %306 = arith.addf %301, %305 : vector<8x32xf32>
    %307 = vector.extract_strided_slice %290 {offsets = [0, 96], sizes = [8, 32], strides = [1, 1]} : vector<8x128xf32> to vector<8x32xf32>
    %308 = arith.mulf %306, %13 : vector<8x32xf32>
    %309 = arith.addf %307, %308 : vector<8x32xf32>
    %310 = arith.negf %309 : vector<8x32xf32>
    %311 = math.exp %310 : vector<8x32xf32>
    %cst_50 = arith.constant 1.000000e+00 : f32
    %312 = vector.broadcast %cst_50 : f32 to vector<8x32xf32>
    %313 = arith.addf %312, %311 : vector<8x32xf32>
    %314 = arith.divf %312, %313 : vector<8x32xf32>
    %315 = math.tanh %306 : vector<8x32xf32>
    %316 = arith.mulf %314, %315 : vector<8x32xf32>
    %cst_51 = arith.constant dense<0.000000e+00> : vector<8x128xf32>
    %317 = tpu.matmul %316, %1, %cst_51 {dimension_numbers = #tpu.dot_dimension_numbers<[1], [0], [0], [1], [0, 0, 1, 1], [], []>} : vector<8x32xf32>, vector<32x128xf32>, vector<8x128xf32> -> vector<8x128xf32>
    %318 = vector.extract_strided_slice %287 {offsets = [0, 128], sizes = [8, 128], strides = [1, 1]} : vector<8x256xf32> to vector<8x128xf32>
    %319 = arith.addf %317, %318 : vector<8x128xf32>
    %320 = arith.addf %319, %7 : vector<8x128xf32>
    %321 = tpu.concatenate %282, %282 in 1 : vector<8x32xf32>, vector<8x32xf32> -> vector<8x64xf32>
    %322 = vector.extract_strided_slice %320 {offsets = [0, 0], sizes = [8, 64], strides = [1, 1]} : vector<8x128xf32> to vector<8x64xf32>
    %323 = arith.mulf %321, %16 : vector<8x64xf32>
    %324 = arith.addf %322, %323 : vector<8x64xf32>
    %325 = arith.negf %324 : vector<8x64xf32>
    %326 = math.exp %325 : vector<8x64xf32>
    %cst_52 = arith.constant 1.000000e+00 : f32
    %327 = vector.broadcast %cst_52 : f32 to vector<8x64xf32>
    %328 = arith.addf %327, %326 : vector<8x64xf32>
    %329 = arith.divf %327, %328 : vector<8x64xf32>
    %330 = vector.extract_strided_slice %329 {offsets = [0, 32], sizes = [8, 32], strides = [1, 1]} : vector<8x64xf32> to vector<8x32xf32>
    %331 = arith.mulf %330, %282 : vector<8x32xf32>
    %332 = vector.extract_strided_slice %329 {offsets = [0, 0], sizes = [8, 32], strides = [1, 1]} : vector<8x64xf32> to vector<8x32xf32>
    %333 = vector.extract_strided_slice %320 {offsets = [0, 64], sizes = [8, 32], strides = [1, 1]} : vector<8x128xf32> to vector<8x32xf32>
    %334 = math.tanh %333 : vector<8x32xf32>
    %335 = arith.mulf %332, %334 : vector<8x32xf32>
    %336 = arith.addf %331, %335 : vector<8x32xf32>
    %337 = vector.extract_strided_slice %320 {offsets = [0, 96], sizes = [8, 32], strides = [1, 1]} : vector<8x128xf32> to vector<8x32xf32>
    %338 = arith.mulf %336, %19 : vector<8x32xf32>
    %339 = arith.addf %337, %338 : vector<8x32xf32>
    %340 = arith.negf %339 : vector<8x32xf32>
    %341 = math.exp %340 : vector<8x32xf32>
    %cst_53 = arith.constant 1.000000e+00 : f32
    %342 = vector.broadcast %cst_53 : f32 to vector<8x32xf32>
    %343 = arith.addf %342, %341 : vector<8x32xf32>
    %344 = arith.divf %342, %343 : vector<8x32xf32>
    %345 = math.tanh %336 : vector<8x32xf32>
    %346 = arith.mulf %344, %345 : vector<8x32xf32>
    %cst_54 = arith.constant dense<0.000000e+00> : vector<8x8xf32>
    %347 = tpu.matmul %346, %3, %cst_54 {dimension_numbers = #tpu.dot_dimension_numbers<[1], [0], [0], [1], [0, 0, 1, 1], [], []>} : vector<8x32xf32>, vector<32x8xf32>, vector<8x8xf32> -> vector<8x8xf32>
    %348 = arith.addf %347, %22 : vector<8x8xf32>
    %349 = math.tanh %348 : vector<8x8xf32>
    %350 = tpu.concatenate %349, %306, %336 in 1 : vector<8x8xf32>, vector<8x32xf32>, vector<8x32xf32> -> vector<8x72xf32>
    %cst_55 = arith.constant dense<0.000000e+00> : vector<8x256xf32>
    %351 = tpu.matmul %350, %0, %cst_55 {dimension_numbers = #tpu.dot_dimension_numbers<[1], [0], [0], [1], [0, 0, 1, 1], [], []>} : vector<8x72xf32>, vector<72x256xf32>, vector<8x256xf32> -> vector<8x256xf32>
    %352 = vector.extract_strided_slice %27 {offsets = [40, 0], sizes = [8, 128], strides = [1, 1]} : vector<64x128xf32> to vector<8x128xf32>
    %353 = vector.extract_strided_slice %351 {offsets = [0, 0], sizes = [8, 128], strides = [1, 1]} : vector<8x256xf32> to vector<8x128xf32>
    %354 = arith.addf %352, %353 : vector<8x128xf32>
    %355 = tpu.concatenate %316, %316 in 1 : vector<8x32xf32>, vector<8x32xf32> -> vector<8x64xf32>
    %356 = vector.extract_strided_slice %354 {offsets = [0, 0], sizes = [8, 64], strides = [1, 1]} : vector<8x128xf32> to vector<8x64xf32>
    %357 = arith.mulf %355, %10 : vector<8x64xf32>
    %358 = arith.addf %356, %357 : vector<8x64xf32>
    %359 = arith.negf %358 : vector<8x64xf32>
    %360 = math.exp %359 : vector<8x64xf32>
    %cst_56 = arith.constant 1.000000e+00 : f32
    %361 = vector.broadcast %cst_56 : f32 to vector<8x64xf32>
    %362 = arith.addf %361, %360 : vector<8x64xf32>
    %363 = arith.divf %361, %362 : vector<8x64xf32>
    %364 = vector.extract_strided_slice %363 {offsets = [0, 32], sizes = [8, 32], strides = [1, 1]} : vector<8x64xf32> to vector<8x32xf32>
    %365 = arith.mulf %364, %316 : vector<8x32xf32>
    %366 = vector.extract_strided_slice %363 {offsets = [0, 0], sizes = [8, 32], strides = [1, 1]} : vector<8x64xf32> to vector<8x32xf32>
    %367 = vector.extract_strided_slice %354 {offsets = [0, 64], sizes = [8, 32], strides = [1, 1]} : vector<8x128xf32> to vector<8x32xf32>
    %368 = math.tanh %367 : vector<8x32xf32>
    %369 = arith.mulf %366, %368 : vector<8x32xf32>
    %370 = arith.addf %365, %369 : vector<8x32xf32>
    %371 = vector.extract_strided_slice %354 {offsets = [0, 96], sizes = [8, 32], strides = [1, 1]} : vector<8x128xf32> to vector<8x32xf32>
    %372 = arith.mulf %370, %13 : vector<8x32xf32>
    %373 = arith.addf %371, %372 : vector<8x32xf32>
    %374 = arith.negf %373 : vector<8x32xf32>
    %375 = math.exp %374 : vector<8x32xf32>
    %cst_57 = arith.constant 1.000000e+00 : f32
    %376 = vector.broadcast %cst_57 : f32 to vector<8x32xf32>
    %377 = arith.addf %376, %375 : vector<8x32xf32>
    %378 = arith.divf %376, %377 : vector<8x32xf32>
    %379 = math.tanh %370 : vector<8x32xf32>
    %380 = arith.mulf %378, %379 : vector<8x32xf32>
    %cst_58 = arith.constant dense<0.000000e+00> : vector<8x128xf32>
    %381 = tpu.matmul %380, %1, %cst_58 {dimension_numbers = #tpu.dot_dimension_numbers<[1], [0], [0], [1], [0, 0, 1, 1], [], []>} : vector<8x32xf32>, vector<32x128xf32>, vector<8x128xf32> -> vector<8x128xf32>
    %382 = vector.extract_strided_slice %351 {offsets = [0, 128], sizes = [8, 128], strides = [1, 1]} : vector<8x256xf32> to vector<8x128xf32>
    %383 = arith.addf %381, %382 : vector<8x128xf32>
    %384 = arith.addf %383, %7 : vector<8x128xf32>
    %385 = tpu.concatenate %346, %346 in 1 : vector<8x32xf32>, vector<8x32xf32> -> vector<8x64xf32>
    %386 = vector.extract_strided_slice %384 {offsets = [0, 0], sizes = [8, 64], strides = [1, 1]} : vector<8x128xf32> to vector<8x64xf32>
    %387 = arith.mulf %385, %16 : vector<8x64xf32>
    %388 = arith.addf %386, %387 : vector<8x64xf32>
    %389 = arith.negf %388 : vector<8x64xf32>
    %390 = math.exp %389 : vector<8x64xf32>
    %cst_59 = arith.constant 1.000000e+00 : f32
    %391 = vector.broadcast %cst_59 : f32 to vector<8x64xf32>
    %392 = arith.addf %391, %390 : vector<8x64xf32>
    %393 = arith.divf %391, %392 : vector<8x64xf32>
    %394 = vector.extract_strided_slice %393 {offsets = [0, 32], sizes = [8, 32], strides = [1, 1]} : vector<8x64xf32> to vector<8x32xf32>
    %395 = arith.mulf %394, %346 : vector<8x32xf32>
    %396 = vector.extract_strided_slice %393 {offsets = [0, 0], sizes = [8, 32], strides = [1, 1]} : vector<8x64xf32> to vector<8x32xf32>
    %397 = vector.extract_strided_slice %384 {offsets = [0, 64], sizes = [8, 32], strides = [1, 1]} : vector<8x128xf32> to vector<8x32xf32>
    %398 = math.tanh %397 : vector<8x32xf32>
    %399 = arith.mulf %396, %398 : vector<8x32xf32>
    %400 = arith.addf %395, %399 : vector<8x32xf32>
    %401 = vector.extract_strided_slice %384 {offsets = [0, 96], sizes = [8, 32], strides = [1, 1]} : vector<8x128xf32> to vector<8x32xf32>
    %402 = arith.mulf %400, %19 : vector<8x32xf32>
    %403 = arith.addf %401, %402 : vector<8x32xf32>
    %404 = arith.negf %403 : vector<8x32xf32>
    %405 = math.exp %404 : vector<8x32xf32>
    %cst_60 = arith.constant 1.000000e+00 : f32
    %406 = vector.broadcast %cst_60 : f32 to vector<8x32xf32>
    %407 = arith.addf %406, %405 : vector<8x32xf32>
    %408 = arith.divf %406, %407 : vector<8x32xf32>
    %409 = math.tanh %400 : vector<8x32xf32>
    %410 = arith.mulf %408, %409 : vector<8x32xf32>
    %cst_61 = arith.constant dense<0.000000e+00> : vector<8x8xf32>
    %411 = tpu.matmul %410, %3, %cst_61 {dimension_numbers = #tpu.dot_dimension_numbers<[1], [0], [0], [1], [0, 0, 1, 1], [], []>} : vector<8x32xf32>, vector<32x8xf32>, vector<8x8xf32> -> vector<8x8xf32>
    %412 = arith.addf %411, %22 : vector<8x8xf32>
    %413 = math.tanh %412 : vector<8x8xf32>
    %414 = tpu.concatenate %413, %370, %400 in 1 : vector<8x8xf32>, vector<8x32xf32>, vector<8x32xf32> -> vector<8x72xf32>
    %cst_62 = arith.constant dense<0.000000e+00> : vector<8x256xf32>
    %415 = tpu.matmul %414, %0, %cst_62 {dimension_numbers = #tpu.dot_dimension_numbers<[1], [0], [0], [1], [0, 0, 1, 1], [], []>} : vector<8x72xf32>, vector<72x256xf32>, vector<8x256xf32> -> vector<8x256xf32>
    %416 = vector.extract_strided_slice %27 {offsets = [48, 0], sizes = [8, 128], strides = [1, 1]} : vector<64x128xf32> to vector<8x128xf32>
    %417 = vector.extract_strided_slice %415 {offsets = [0, 0], sizes = [8, 128], strides = [1, 1]} : vector<8x256xf32> to vector<8x128xf32>
    %418 = arith.addf %416, %417 : vector<8x128xf32>
    %419 = tpu.concatenate %380, %380 in 1 : vector<8x32xf32>, vector<8x32xf32> -> vector<8x64xf32>
    %420 = vector.extract_strided_slice %418 {offsets = [0, 0], sizes = [8, 64], strides = [1, 1]} : vector<8x128xf32> to vector<8x64xf32>
    %421 = arith.mulf %419, %10 : vector<8x64xf32>
    %422 = arith.addf %420, %421 : vector<8x64xf32>
    %423 = arith.negf %422 : vector<8x64xf32>
    %424 = math.exp %423 : vector<8x64xf32>
    %cst_63 = arith.constant 1.000000e+00 : f32
    %425 = vector.broadcast %cst_63 : f32 to vector<8x64xf32>
    %426 = arith.addf %425, %424 : vector<8x64xf32>
    %427 = arith.divf %425, %426 : vector<8x64xf32>
    %428 = vector.extract_strided_slice %427 {offsets = [0, 32], sizes = [8, 32], strides = [1, 1]} : vector<8x64xf32> to vector<8x32xf32>
    %429 = arith.mulf %428, %380 : vector<8x32xf32>
    %430 = vector.extract_strided_slice %427 {offsets = [0, 0], sizes = [8, 32], strides = [1, 1]} : vector<8x64xf32> to vector<8x32xf32>
    %431 = vector.extract_strided_slice %418 {offsets = [0, 64], sizes = [8, 32], strides = [1, 1]} : vector<8x128xf32> to vector<8x32xf32>
    %432 = math.tanh %431 : vector<8x32xf32>
    %433 = arith.mulf %430, %432 : vector<8x32xf32>
    %434 = arith.addf %429, %433 : vector<8x32xf32>
    %435 = vector.extract_strided_slice %418 {offsets = [0, 96], sizes = [8, 32], strides = [1, 1]} : vector<8x128xf32> to vector<8x32xf32>
    %436 = arith.mulf %434, %13 : vector<8x32xf32>
    %437 = arith.addf %435, %436 : vector<8x32xf32>
    %438 = arith.negf %437 : vector<8x32xf32>
    %439 = math.exp %438 : vector<8x32xf32>
    %cst_64 = arith.constant 1.000000e+00 : f32
    %440 = vector.broadcast %cst_64 : f32 to vector<8x32xf32>
    %441 = arith.addf %440, %439 : vector<8x32xf32>
    %442 = arith.divf %440, %441 : vector<8x32xf32>
    %443 = math.tanh %434 : vector<8x32xf32>
    %444 = arith.mulf %442, %443 : vector<8x32xf32>
    %cst_65 = arith.constant dense<0.000000e+00> : vector<8x128xf32>
    %445 = tpu.matmul %444, %1, %cst_65 {dimension_numbers = #tpu.dot_dimension_numbers<[1], [0], [0], [1], [0, 0, 1, 1], [], []>} : vector<8x32xf32>, vector<32x128xf32>, vector<8x128xf32> -> vector<8x128xf32>
    %446 = vector.extract_strided_slice %415 {offsets = [0, 128], sizes = [8, 128], strides = [1, 1]} : vector<8x256xf32> to vector<8x128xf32>
    %447 = arith.addf %445, %446 : vector<8x128xf32>
    %448 = arith.addf %447, %7 : vector<8x128xf32>
    %449 = tpu.concatenate %410, %410 in 1 : vector<8x32xf32>, vector<8x32xf32> -> vector<8x64xf32>
    %450 = vector.extract_strided_slice %448 {offsets = [0, 0], sizes = [8, 64], strides = [1, 1]} : vector<8x128xf32> to vector<8x64xf32>
    %451 = arith.mulf %449, %16 : vector<8x64xf32>
    %452 = arith.addf %450, %451 : vector<8x64xf32>
    %453 = arith.negf %452 : vector<8x64xf32>
    %454 = math.exp %453 : vector<8x64xf32>
    %cst_66 = arith.constant 1.000000e+00 : f32
    %455 = vector.broadcast %cst_66 : f32 to vector<8x64xf32>
    %456 = arith.addf %455, %454 : vector<8x64xf32>
    %457 = arith.divf %455, %456 : vector<8x64xf32>
    %458 = vector.extract_strided_slice %457 {offsets = [0, 32], sizes = [8, 32], strides = [1, 1]} : vector<8x64xf32> to vector<8x32xf32>
    %459 = arith.mulf %458, %410 : vector<8x32xf32>
    %460 = vector.extract_strided_slice %457 {offsets = [0, 0], sizes = [8, 32], strides = [1, 1]} : vector<8x64xf32> to vector<8x32xf32>
    %461 = vector.extract_strided_slice %448 {offsets = [0, 64], sizes = [8, 32], strides = [1, 1]} : vector<8x128xf32> to vector<8x32xf32>
    %462 = math.tanh %461 : vector<8x32xf32>
    %463 = arith.mulf %460, %462 : vector<8x32xf32>
    %464 = arith.addf %459, %463 : vector<8x32xf32>
    %465 = vector.extract_strided_slice %448 {offsets = [0, 96], sizes = [8, 32], strides = [1, 1]} : vector<8x128xf32> to vector<8x32xf32>
    %466 = arith.mulf %464, %19 : vector<8x32xf32>
    %467 = arith.addf %465, %466 : vector<8x32xf32>
    %468 = arith.negf %467 : vector<8x32xf32>
    %469 = math.exp %468 : vector<8x32xf32>
    %cst_67 = arith.constant 1.000000e+00 : f32
    %470 = vector.broadcast %cst_67 : f32 to vector<8x32xf32>
    %471 = arith.addf %470, %469 : vector<8x32xf32>
    %472 = arith.divf %470, %471 : vector<8x32xf32>
    %473 = math.tanh %464 : vector<8x32xf32>
    %474 = arith.mulf %472, %473 : vector<8x32xf32>
    %cst_68 = arith.constant dense<0.000000e+00> : vector<8x8xf32>
    %475 = tpu.matmul %474, %3, %cst_68 {dimension_numbers = #tpu.dot_dimension_numbers<[1], [0], [0], [1], [0, 0, 1, 1], [], []>} : vector<8x32xf32>, vector<32x8xf32>, vector<8x8xf32> -> vector<8x8xf32>
    %476 = arith.addf %475, %22 : vector<8x8xf32>
    %477 = math.tanh %476 : vector<8x8xf32>
    %478 = tpu.concatenate %477, %434, %464 in 1 : vector<8x8xf32>, vector<8x32xf32>, vector<8x32xf32> -> vector<8x72xf32>
    %cst_69 = arith.constant dense<0.000000e+00> : vector<8x256xf32>
    %479 = tpu.matmul %478, %0, %cst_69 {dimension_numbers = #tpu.dot_dimension_numbers<[1], [0], [0], [1], [0, 0, 1, 1], [], []>} : vector<8x72xf32>, vector<72x256xf32>, vector<8x256xf32> -> vector<8x256xf32>
    %480 = vector.extract_strided_slice %27 {offsets = [56, 0], sizes = [8, 128], strides = [1, 1]} : vector<64x128xf32> to vector<8x128xf32>
    %481 = vector.extract_strided_slice %479 {offsets = [0, 0], sizes = [8, 128], strides = [1, 1]} : vector<8x256xf32> to vector<8x128xf32>
    %482 = arith.addf %480, %481 : vector<8x128xf32>
    %483 = tpu.concatenate %444, %444 in 1 : vector<8x32xf32>, vector<8x32xf32> -> vector<8x64xf32>
    %484 = vector.extract_strided_slice %482 {offsets = [0, 0], sizes = [8, 64], strides = [1, 1]} : vector<8x128xf32> to vector<8x64xf32>
    %485 = arith.mulf %483, %10 : vector<8x64xf32>
    %486 = arith.addf %484, %485 : vector<8x64xf32>
    %487 = arith.negf %486 : vector<8x64xf32>
    %488 = math.exp %487 : vector<8x64xf32>
    %cst_70 = arith.constant 1.000000e+00 : f32
    %489 = vector.broadcast %cst_70 : f32 to vector<8x64xf32>
    %490 = arith.addf %489, %488 : vector<8x64xf32>
    %491 = arith.divf %489, %490 : vector<8x64xf32>
    %492 = vector.extract_strided_slice %491 {offsets = [0, 32], sizes = [8, 32], strides = [1, 1]} : vector<8x64xf32> to vector<8x32xf32>
    %493 = arith.mulf %492, %444 : vector<8x32xf32>
    %494 = vector.extract_strided_slice %491 {offsets = [0, 0], sizes = [8, 32], strides = [1, 1]} : vector<8x64xf32> to vector<8x32xf32>
    %495 = vector.extract_strided_slice %482 {offsets = [0, 64], sizes = [8, 32], strides = [1, 1]} : vector<8x128xf32> to vector<8x32xf32>
    %496 = math.tanh %495 : vector<8x32xf32>
    %497 = arith.mulf %494, %496 : vector<8x32xf32>
    %498 = arith.addf %493, %497 : vector<8x32xf32>
    %499 = vector.extract_strided_slice %482 {offsets = [0, 96], sizes = [8, 32], strides = [1, 1]} : vector<8x128xf32> to vector<8x32xf32>
    %500 = arith.mulf %498, %13 : vector<8x32xf32>
    %501 = arith.addf %499, %500 : vector<8x32xf32>
    %502 = arith.negf %501 : vector<8x32xf32>
    %503 = math.exp %502 : vector<8x32xf32>
    %cst_71 = arith.constant 1.000000e+00 : f32
    %504 = vector.broadcast %cst_71 : f32 to vector<8x32xf32>
    %505 = arith.addf %504, %503 : vector<8x32xf32>
    %506 = arith.divf %504, %505 : vector<8x32xf32>
    %507 = math.tanh %498 : vector<8x32xf32>
    %508 = arith.mulf %506, %507 : vector<8x32xf32>
    %cst_72 = arith.constant dense<0.000000e+00> : vector<8x128xf32>
    %509 = tpu.matmul %508, %1, %cst_72 {dimension_numbers = #tpu.dot_dimension_numbers<[1], [0], [0], [1], [0, 0, 1, 1], [], []>} : vector<8x32xf32>, vector<32x128xf32>, vector<8x128xf32> -> vector<8x128xf32>
    %510 = vector.extract_strided_slice %479 {offsets = [0, 128], sizes = [8, 128], strides = [1, 1]} : vector<8x256xf32> to vector<8x128xf32>
    %511 = arith.addf %509, %510 : vector<8x128xf32>
    %512 = arith.addf %511, %7 : vector<8x128xf32>
    %513 = tpu.concatenate %474, %474 in 1 : vector<8x32xf32>, vector<8x32xf32> -> vector<8x64xf32>
    %514 = vector.extract_strided_slice %512 {offsets = [0, 0], sizes = [8, 64], strides = [1, 1]} : vector<8x128xf32> to vector<8x64xf32>
    %515 = arith.mulf %513, %16 : vector<8x64xf32>
    %516 = arith.addf %514, %515 : vector<8x64xf32>
    %517 = arith.negf %516 : vector<8x64xf32>
    %518 = math.exp %517 : vector<8x64xf32>
    %cst_73 = arith.constant 1.000000e+00 : f32
    %519 = vector.broadcast %cst_73 : f32 to vector<8x64xf32>
    %520 = arith.addf %519, %518 : vector<8x64xf32>
    %521 = arith.divf %519, %520 : vector<8x64xf32>
    %522 = vector.extract_strided_slice %521 {offsets = [0, 32], sizes = [8, 32], strides = [1, 1]} : vector<8x64xf32> to vector<8x32xf32>
    %523 = arith.mulf %522, %474 : vector<8x32xf32>
    %524 = vector.extract_strided_slice %521 {offsets = [0, 0], sizes = [8, 32], strides = [1, 1]} : vector<8x64xf32> to vector<8x32xf32>
    %525 = vector.extract_strided_slice %512 {offsets = [0, 64], sizes = [8, 32], strides = [1, 1]} : vector<8x128xf32> to vector<8x32xf32>
    %526 = math.tanh %525 : vector<8x32xf32>
    %527 = arith.mulf %524, %526 : vector<8x32xf32>
    %528 = arith.addf %523, %527 : vector<8x32xf32>
    %529 = vector.extract_strided_slice %512 {offsets = [0, 96], sizes = [8, 32], strides = [1, 1]} : vector<8x128xf32> to vector<8x32xf32>
    %530 = arith.mulf %528, %19 : vector<8x32xf32>
    %531 = arith.addf %529, %530 : vector<8x32xf32>
    %532 = arith.negf %531 : vector<8x32xf32>
    %533 = math.exp %532 : vector<8x32xf32>
    %cst_74 = arith.constant 1.000000e+00 : f32
    %534 = vector.broadcast %cst_74 : f32 to vector<8x32xf32>
    %535 = arith.addf %534, %533 : vector<8x32xf32>
    %536 = arith.divf %534, %535 : vector<8x32xf32>
    %537 = math.tanh %528 : vector<8x32xf32>
    %538 = arith.mulf %536, %537 : vector<8x32xf32>
    %cst_75 = arith.constant dense<0.000000e+00> : vector<8x8xf32>
    %539 = tpu.matmul %538, %3, %cst_75 {dimension_numbers = #tpu.dot_dimension_numbers<[1], [0], [0], [1], [0, 0, 1, 1], [], []>} : vector<8x32xf32>, vector<32x8xf32>, vector<8x8xf32> -> vector<8x8xf32>
    %540 = arith.addf %539, %22 : vector<8x8xf32>
    %541 = math.tanh %540 : vector<8x8xf32>
    %542 = tpu.concatenate %93, %157, %221, %285, %349, %413, %477, %541 in 0 : vector<8x8xf32>, vector<8x8xf32>, vector<8x8xf32>, vector<8x8xf32>, vector<8x8xf32>, vector<8x8xf32>, vector<8x8xf32>, vector<8x8xf32> -> vector<64x8xf32>
    %c0_76 = arith.constant 0 : index
    %c0_77 = arith.constant 0 : index
    %543 = vector.load %arg5[%c0_76, %c0_77] : memref<64x8xf32, #tpu.memory_space<vmem>>, vector<64x8xf32>
    tpu.vector_store %arg5[%c0_76, %c0_77], %542 {strides = array<i32>} : memref<64x8xf32, #tpu.memory_space<vmem>>, vector<64x8xf32>,
    return
  }
  func.func @transform_0(%arg0: i32) -> (i32, i32) {
    %c0_i32 = arith.constant 0 : i32
    %c0_i32_0 = arith.constant 0 : i32
    %c0_i32_1 = arith.constant 0 : i32
    return %c0_i32, %c0_i32_0 : i32, i32
  }
  func.func @transform_1(%arg0: i32) -> (i32, i32) {
    %c0_i32 = arith.constant 0 : i32
    %c0_i32_0 = arith.constant 0 : i32
    %c0_i32_1 = arith.constant 0 : i32
    return %c0_i32, %c0_i32_0 : i32, i32
  }
  func.func @transform_2(%arg0: i32) -> (i32, i32) {
    %c0_i32 = arith.constant 0 : i32
    %c0_i32_0 = arith.constant 0 : i32
    %c0_i32_1 = arith.constant 0 : i32
    return %c0_i32, %c0_i32_0 : i32, i32
  }
  func.func @transform_3(%arg0: i32) -> (i32, i32) {
    %c0_i32 = arith.constant 0 : i32
    %c0_i32_0 = arith.constant 0 : i32
    %c0_i32_1 = arith.constant 0 : i32
    return %c0_i32, %c0_i32_0 : i32, i32
  }
  func.func @transform_4(%arg0: i32) -> (i32, i32) {
    %c0_i32 = arith.constant 0 : i32
    %c0_i32_0 = arith.constant 0 : i32
    %c0_i32_1 = arith.constant 0 : i32
    return %c0_i32, %c0_i32_0 : i32, i32
  }
}

</mosaic_0001>

<llo_original>
// kernel: tpu_custom_call.1
$region0: #{tpu_custom_call.1}
  #allocation0 [shape = 'u32[]', space=smem, size = 0x4, offset = 0x4, fixed_abs, tag = 'smem constant byte address 0x4 - core index']
  #allocation1 [shape = 'u32[72,128]{1,0:T(1,128)}', space=vmem, size = 0x9000, scoped, tag = 'internal scratch']
  %s0 = inlined_call_operand.vmem [shape: f32[64,12], index: 0, kind: input, shape index: {}]
  %s1 = inlined_call_operand.hbm [shape: f32[152,256], index: 1, kind: input, shape index: {}]
  %s2 = inlined_call_operand.vmem [shape: f32[7,128], index: 2, kind: input, shape index: {}]
  %s3 = inlined_call_operand.vmem [shape: f32[8,136], index: 3, kind: input, shape index: {}]
  %s4 = inlined_call_operand.vmem [shape: f32[64,8], index: 4, kind: output, shape index: {}]
  %s5 = sld [smem:[#allocation0]]
  $region30: #{tpu_custom_call.1} parent=0
    _
  %s7 = ssub.s32 1, %s5
  %s8 = scalar_select 0, %s7, %s5
  $region1: #{tpu_custom_call.1} parent=0
    #allocation2 [shape = 'u8[155648]{0}', space=vmem, size = 0x26000, scoped, tag = 'input window, operand 1, single buffered']
    #allocation3 [shape = 's32[1]{0}', space=sflag, size = 0x4, scoped, tag = 'scoped memory for tpu_custom_call.1']
    %9 = vsyncpa [#allocation3], 0
    // Predicated region
    $region2: #{tpu_custom_call.1} parent=1 // pred_check
      _
    $region3: #{tpu_custom_call.1} parent=1 // pred_check_branch
      %11 = sbr.rel (0) target = $region5
    $region4: #{tpu_custom_call.1} parent=1 // pred_region
      _
    $region5: #{tpu_custom_call.1} parent=1 // pred_fallthru
      _
    // Predicated region
    $region6: #{tpu_custom_call.1} parent=1 // pred_check
      _
    $region7: #{tpu_custom_call.1} parent=1 // pred_check_branch
      %13 = sbr.rel (0) target = $region9
    $region8: #{tpu_custom_call.1} parent=1 // pred_region
      %15 = vsyncadd [#allocation3], 0
      %s16 = sshll.u32 %s1, 4
      %s17 = int_to_ptr.hbm [resolvable:$true] %s16
      %s18 = sshll.u32 [#allocation2], 4
      %s19 = int_to_ptr.vmem [resolvable:$true] %s18
      %24 = dma.hbm_to_vmem [thread:$0]  %s17, 4864, %s19, [#allocation3], 256, 256, 16
    $region9: #{tpu_custom_call.1} parent=1 // pred_fallthru
      _
    // Predicated region
    $region10: #{tpu_custom_call.1} parent=1 // pred_check
      _
    $region11: #{tpu_custom_call.1} parent=1 // pred_check_branch
      %26 = sbr.rel (0) target = $region13
    $region12: #{tpu_custom_call.1} parent=1 // pred_region
      _
    $region13: #{tpu_custom_call.1} parent=1 // pred_fallthru
      _
    // Predicated region
    $region14: #{tpu_custom_call.1} parent=1 // pred_check
      _
    $region15: #{tpu_custom_call.1} parent=1 // pred_check_branch
      %28 = sbr.rel (0) target = $region17
    $region16: #{tpu_custom_call.1} parent=1 // pred_region
      _
    $region17: #{tpu_custom_call.1} parent=1 // pred_fallthru
      _
    // Predicated region
    $region18: #{tpu_custom_call.1} parent=1 // pred_check
      _
    $region19: #{tpu_custom_call.1} parent=1 // pred_check_branch
      %30 = sbr.rel (0) target = $region21
    $region20: #{tpu_custom_call.1} parent=1 // pred_region
      %32 = dma.done [#allocation3], 4864
    $region21: #{tpu_custom_call.1} parent=1 // pred_fallthru
      _
    %v33 = vld [vmem:[#allocation2] sm:$0xff]
    %v34 = vld [vmem:[#allocation2 + $0x8] sm:$0xff]
    %v35 = vld [vmem:[#allocation2 + $0x10] sm:$0xff]
    %v36 = vld [vmem:[#allocation2 + $0x18] sm:$0xff]
    %v37 = vld [vmem:[#allocation2 + $0x20] sm:$0xff]
    %v38 = vld [vmem:[#allocation2 + $0x28] sm:$0xff]
    %v39 = vld [vmem:[#allocation2 + $0x30] sm:$0xff]
    %v40 = vld [vmem:[#allocation2 + $0x38] sm:$0xff]
    %v41 = vld [vmem:[#allocation2 + $0x40] sm:$0xff]
    %v42 = vld [vmem:[#allocation2 + $0x48] sm:$0xff]
    %v43 = vld [vmem:[#allocation2 + $0x50] sm:$0xff]
    %v44 = vld [vmem:[#allocation2 + $0x58] sm:$0xff]
    %v45 = vld [vmem:[#allocation2 + $0x60] sm:$0xff]
    %v46 = vld [vmem:[#allocation2 + $0x68] sm:$0xff]
    %v47 = vld [vmem:[#allocation2 + $0x70] sm:$0xff]
    %v48 = vld [vmem:[#allocation2 + $0x78] sm:$0xff]
    %v49 = vld [vmem:[#allocation2 + $0x80] sm:$0xff]
    %v50 = vld [vmem:[#allocation2 + $0x88] sm:$0xff]
    %v51 = vld [vmem:[#allocation2 + $0x90] sm:$0xff]
    %v52 = vld [vmem:[#allocation2 + $0xa0] sm:$0xff]
    %v53 = vld [vmem:[#allocation2 + $0xb0] sm:$0xff]
    %v54 = vld [vmem:[#allocation2 + $0xc0] sm:$0xff]
    %v55 = vld [vmem:[#allocation2 + $0xd0] sm:$0xff]
    %v56 = vld [vmem:[#allocation2 + $0xe0] sm:$0xf]
    %v57 = vld [vmem:[#allocation2 + $0xf0] sm:$0xff]
    %v58 = vld [vmem:[#allocation2 + $0x100] sm:$0xff]
    %v59 = vld [vmem:[#allocation2 + $0x110] sm:$0xff]
    %v60 = vld [vmem:[#allocation2 + $0x120] sm:$0xff]
    %v61 = vld [vmem:[%s2] sm:$0x1]
    %v62 = vld [vmem:[%s2 + $0x1] sm:$0x1]
    %v63 = vperm.slane %v62, 0
    %v64 = vld [vmem:[%s2 + $0x2] sm:$0x1]
    %v65 = vperm.slane %v64, 0
    %v66 = vld [vmem:[%s2 + $0x3] sm:$0x1]
    %v67 = vperm.slane %v66, 0
    %v68 = vld [vmem:[%s2 + $0x4] sm:$0x1]
    %v69 = vperm.slane %v68, 0
    %v70 = vld [vmem:[%s2 + $0x5] sm:$0x1]
    %v71 = vperm.slane %v70, 0
    %v72 = vld [vmem:[%s2 + $0x6] sm:$0x1]
    %v73 = vperm.slane %v72, 0
    %v74 = vld [vmem:[%s0] sm:$0xff]
    %v75 = vld [vmem:[%s0 + $0x8] sm:$0xff]
    %v76 = vld [vmem:[%s0 + $0x10] sm:$0xff]
    %v77 = vld [vmem:[%s0 + $0x18] sm:$0xff]
    %v78 = vld [vmem:[%s0 + $0x20] sm:$0xff]
    %v79 = vld [vmem:[%s0 + $0x28] sm:$0xff]
    %v80 = vld [vmem:[%s0 + $0x30] sm:$0xff]
    %v81 = vld [vmem:[%s0 + $0x38] sm:$0xff]
    %v82 = vperm.slane %v61, 0
    %vm83 = vcmask 97280
    %v85 = vsel %vm83, %v74, 0
    %v88 = vsel %vm83, %v75, 0
    %v91 = vsel %vm83, %v76, 0
    %v94 = vsel %vm83, %v77, 0
    %v97 = vsel %vm83, %v78, 0
    %v100 = vsel %vm83, %v79, 0
    %v103 = vsel %vm83, %v80, 0
    %v106 = vsel %vm83, %v81, 0
    %vm108 = vcmask 1043456
    %v110 = vsel %vm108, %v56, 0
    %112 = vmatpush.msra.mxu0 0.0
    %113 = vmatpush.msra.mxu0 0.0
    %114 = vmatpush.msra.mxu0 0.0
    %115 = vmatpush.msra.mxu0 0.0
    %116 = vmatpush.msra.mxu0 0.0
    %117 = vmatpush.msra.mxu0 0.0
    %118 = vmatpush.msra.mxu0 0.0
    %119 = vmatpush.msra.mxu0 0.0
    %120 = vmatpush.msra.mxu0 0.0
    %121 = vmatpush.msra.mxu0 0.0
    %122 = vmatpush.msra.mxu0 0.0
    %123 = vmatpush.msra.mxu0 0.0
    %124 = vmatpush.msra.mxu0 0.0
    %125 = vmatpush.msra.mxu0 0.0
    %126 = vmatpush.msra.mxu0 %v110
    %127 = vmatpush.msra.mxu0 %v55
    %128 = vmatmul.f32.gmra.mxu0 %v85
    %v129 = vpop.f32.mrf.mxu0
    %v130 = vadd.f32 %v82, %v129
    %131 = vmatmul.f32.gmra.mxu0 %v88
    %v132 = vpop.f32.mrf.mxu0
    %v133 = vadd.f32 %v82, %v132
    %134 = vmatmul.f32.gmra.mxu0 %v91
    %v135 = vpop.f32.mrf.mxu0
    %v136 = vadd.f32 %v82, %v135
    %137 = vmatmul.f32.gmra.mxu0 %v94
    %v138 = vpop.f32.mrf.mxu0
    %v139 = vadd.f32 %v82, %v138
    %140 = vmatmul.f32.gmra.mxu0 %v97
    %v141 = vpop.f32.mrf.mxu0
    %v142 = vadd.f32 %v82, %v141
    %143 = vmatmul.f32.gmra.mxu0 %v100
    %v144 = vpop.f32.mrf.mxu0
    %v145 = vadd.f32 %v82, %v144
    %146 = vmatmul.f32.gmra.mxu0 %v103
    %v147 = vpop.f32.mrf.mxu0
    %v148 = vadd.f32 %v82, %v147
    %149 = vmatmul.f32.gmra.mxu0 %v106
    %v150 = vpop.f32.mrf.mxu0
    %v151 = vadd.f32 %v82, %v150
    %152 = vdwg.mxu0
    %v153 = vld [vmem:[%s3] sm:$0xff]
    %v154 = vld [vmem:[%s3 + $0x8] sm:$0xff]
    %vm155 = vcmask 588800
    %v157 = vsel %vm155, %v153, 0
    %159 = vmatpush.msra.mxu0 0.0
    %160 = vmatpush.msra.mxu0 0.0
    %161 = vmatpush.msra.mxu0 0.0
    %162 = vmatpush.msra.mxu0 0.0
    %163 = vmatpush.msra.mxu0 0.0
    %164 = vmatpush.msra.mxu0 0.0
    %165 = vmatpush.msra.mxu0 0.0
    %166 = vmatpush.msra.mxu0 %v49
    %167 = vmatpush.msra.mxu0 %v47
    %168 = vmatpush.msra.mxu0 %v45
    %169 = vmatpush.msra.mxu0 %v43
    %170 = vmatpush.msra.mxu0 %v41
    %171 = vmatpush.msra.mxu0 %v39
    %172 = vmatpush.msra.mxu0 %v37
    %173 = vmatpush.msra.mxu0 %v35
    %174 = vmatpush.msra.mxu0 %v33
    %175 = vmatmul.f32.gmra.mxu0 %v157
    %v176 = vpop.f32.mrf.mxu0
    %v177 = vadd.f32 0.0, %v176
    %178 = vdwg.mxu0
    %179 = vmatpush.msra.mxu0 0.0
    %180 = vmatpush.msra.mxu0 0.0
    %181 = vmatpush.msra.mxu0 0.0
    %182 = vmatpush.msra.mxu0 0.0
    %183 = vmatpush.msra.mxu0 0.0
    %184 = vmatpush.msra.mxu0 0.0
    %185 = vmatpush.msra.mxu0 0.0
    %186 = vmatpush.msra.mxu0 %v50
    %187 = vmatpush.msra.mxu0 %v48
    %188 = vmatpush.msra.mxu0 %v46
    %189 = vmatpush.msra.mxu0 %v44
    %190 = vmatpush.msra.mxu0 %v42
    %191 = vmatpush.msra.mxu0 %v40
    %192 = vmatpush.msra.mxu0 %v38
    %193 = vmatpush.msra.mxu0 %v36
    %194 = vmatpush.msra.mxu0 %v34
    %195 = vmatmul.f32.gmra.mxu0 %v157
    %v196 = vpop.f32.mrf.mxu0
    %v197 = vadd.f32 0.0, %v196
    %198 = vdwg.mxu0
    %v199 = vadd.f32 %v130, %v177
    %200 = vrot.lane.b32.xlu0 %v153, 56
    %v201 = vpop.permute.xlu0 %200
    %203 = vrot.lane.b32.xlu0 %v153, 88
    %v204 = vpop.permute.xlu0 %203
    %vm206 = vcmask 261120
    %v207 = vsel %vm206, %v201, %v204
    %v208 = vmul.f32 %v207, %v65
    %v209 = vadd.f32 %v199, %v208
    %v210 = vxor.u32 %v209, 2147483648
    %v211 = vmul.f32 %v210, 1.442695
    %v212 = vpow.pop %v211
    %v213 = vadd.f32 %v212, 1.0
    %v214 = vrcp.pop %v213
    %v215 = vmul.f32 %v213, %v214
    %v216 = vsub.f32 1.0, %v215
    %v217 = vmul.f32 %v214, %v216
    %v218 = vadd.f32 %v214, %v217
    %vm219 = vweird.f32 %v213
    %vm220 = vweird.f32 %v214
    %vm221 = vmor %vm219, %vm220
    %v222 = vsel %vm221, %v214, %v218
    %v223 = vand.u32 2147483647, %v213
    %vm224 = vcmp.eq.f32.partialorder %v223, 8.507059e+37
    %v225 = vand.u32 %v213, 2147483648
    %v226 = vor.u32 1.1754944e-38, %v225
    %v227 = vsel %vm224, %v226, %v222
    %v228 = vmul.f32 1.0, %v227
    %v229 = vmul.f32 %v228, %v204
    %v230 = vtanh.pop %v199
    %232 = vrot.lane.b32.xlu0 %v230, 64
    %v233 = vpop.permute.xlu0 %232
    %v235 = vmul.f32 %v228, %v233
    %237 = vrot.lane.b32.xlu0 %v235, 32
    %v238 = vpop.permute.xlu0 %237
    %v240 = vadd.f32 %v229, %v238
    %242 = vrot.lane.b32.xlu0 %v67, 32
    %v243 = vpop.permute.xlu0 %242
    %v245 = vmul.f32 %v240, %v243
    %247 = vrot.lane.b32.xlu0 %v245, 64
    %v248 = vpop.permute.xlu0 %247
    %v250 = vadd.f32 %v199, %v248
    %v251 = vxor.u32 %v250, 2147483648
    %v252 = vmul.f32 %v251, 1.442695
    %v253 = vpow.pop %v252
    %v254 = vadd.f32 %v253, 1.0
    %v255 = vrcp.pop %v254
    %v256 = vmul.f32 %v254, %v255
    %v257 = vsub.f32 1.0, %v256
    %v258 = vmul.f32 %v255, %v257
    %v259 = vadd.f32 %v255, %v258
    %vm260 = vweird.f32 %v254
    %vm261 = vweird.f32 %v255
    %vm262 = vmor %vm260, %vm261
    %v263 = vsel %vm262, %v255, %v259
    %v264 = vand.u32 2147483647, %v254
    %vm265 = vcmp.eq.f32.partialorder %v264, 8.507059e+37
    %v266 = vand.u32 %v254, 2147483648
    %v267 = vor.u32 1.1754944e-38, %v266
    %v268 = vsel %vm265, %v267, %v263
    %v269 = vmul.f32 1.0, %v268
    %v270 = vtanh.pop %v240
    %272 = vrot.lane.b32.xlu0 %v270, 64
    %v273 = vpop.permute.xlu0 %272
    %v275 = vmul.f32 %v269, %v273
    %277 = vrot.lane.b32.xlu0 %v275, 32
    %v278 = vpop.permute.xlu0 %277
    %v279 = vsel %vm206, %v278, 0
    %281 = vmatpush.msra.mxu0 0.0
    %282 = vmatpush.msra.mxu0 0.0
    %283 = vmatpush.msra.mxu0 0.0
    %284 = vmatpush.msra.mxu0 0.0
    %285 = vmatpush.msra.mxu0 0.0
    %286 = vmatpush.msra.mxu0 0.0
    %287 = vmatpush.msra.mxu0 0.0
    %288 = vmatpush.msra.mxu0 0.0
    %289 = vmatpush.msra.mxu0 0.0
    %290 = vmatpush.msra.mxu0 0.0
    %291 = vmatpush.msra.mxu0 0.0
    %292 = vmatpush.msra.mxu0 0.0
    %293 = vmatpush.msra.mxu0 %v54
    %294 = vmatpush.msra.mxu0 %v53
    %295 = vmatpush.msra.mxu0 %v52
    %296 = vmatpush.msra.mxu0 %v51
    %297 = vmatmul.f32.gmra.mxu0 %v279
    %v298 = vpop.f32.mrf.mxu0
    %v299 = vadd.f32 %v197, %v298
    %300 = vdwg.mxu0
    %v301 = vadd.f32 %v299, %v63
    %303 = vrot.lane.b32.xlu0 %v153, 24
    %v304 = vpop.permute.xlu0 %303
    %305 = vrot.lane.b32.xlu0 %v154, 24
    %v306 = vpop.permute.xlu0 %305
    %vm307 = vcmask 195584
    %v308 = vsel %vm307, %v304, %v306
    %310 = vrot.lane.b32.xlu0 %v154, 56
    %v311 = vpop.permute.xlu0 %310
    %vm312 = vcmask 457728
    %v313 = vsel %vm312, %v201, %v311
    %v315 = vsel %vm206, %v308, %v313
    %v316 = vmul.f32 %v315, %v69
    %v317 = vadd.f32 %v301, %v316
    %v318 = vxor.u32 %v317, 2147483648
    %v319 = vmul.f32 %v318, 1.442695
    %v320 = vpow.pop %v319
    %v321 = vadd.f32 %v320, 1.0
    %v322 = vrcp.pop %v321
    %v323 = vmul.f32 %v321, %v322
    %v324 = vsub.f32 1.0, %v323
    %v325 = vmul.f32 %v322, %v324
    %v326 = vadd.f32 %v322, %v325
    %vm327 = vweird.f32 %v321
    %vm328 = vweird.f32 %v322
    %vm329 = vmor %vm327, %vm328
    %v330 = vsel %vm329, %v322, %v326
    %v331 = vand.u32 2147483647, %v321
    %vm332 = vcmp.eq.f32.partialorder %v331, 8.507059e+37
    %v333 = vand.u32 %v321, 2147483648
    %v334 = vor.u32 1.1754944e-38, %v333
    %v335 = vsel %vm332, %v334, %v330
    %v336 = vmul.f32 1.0, %v335
    %v337 = vmul.f32 %v336, %v313
    %v338 = vtanh.pop %v301
    %340 = vrot.lane.b32.xlu0 %v338, 64
    %v341 = vpop.permute.xlu0 %340
    %v343 = vmul.f32 %v336, %v341
    %345 = vrot.lane.b32.xlu0 %v343, 32
    %v346 = vpop.permute.xlu0 %345
    %v348 = vadd.f32 %v337, %v346
    %350 = vrot.lane.b32.xlu0 %v71, 32
    %v351 = vpop.permute.xlu0 %350
    %v353 = vmul.f32 %v348, %v351
    %355 = vrot.lane.b32.xlu0 %v353, 64
    %v356 = vpop.permute.xlu0 %355
    %v358 = vadd.f32 %v301, %v356
    %v359 = vxor.u32 %v358, 2147483648
    %v360 = vmul.f32 %v359, 1.442695
    %v361 = vpow.pop %v360
    %v362 = vadd.f32 %v361, 1.0
    %v363 = vrcp.pop %v362
    %v364 = vmul.f32 %v362, %v363
    %v365 = vsub.f32 1.0, %v364
    %v366 = vmul.f32 %v363, %v365
    %v367 = vadd.f32 %v363, %v366
    %vm368 = vweird.f32 %v362
    %vm369 = vweird.f32 %v363
    %vm370 = vmor %vm368, %vm369
    %v371 = vsel %vm370, %v363, %v367
    %v372 = vand.u32 2147483647, %v362
    %vm373 = vcmp.eq.f32.partialorder %v372, 8.507059e+37
    %v374 = vand.u32 %v362, 2147483648
    %v375 = vor.u32 1.1754944e-38, %v374
    %v376 = vsel %vm373, %v375, %v371
    %v377 = vmul.f32 1.0, %v376
    %v378 = vtanh.pop %v348
    %380 = vrot.lane.b32.xlu0 %v378, 64
    %v381 = vpop.permute.xlu0 %380
    %v383 = vmul.f32 %v377, %v381
    %385 = vrot.lane.b32.xlu0 %v383, 32
    %v386 = vpop.permute.xlu0 %385
    %v387 = vsel %vm206, %v386, 0
    %389 = vmatpush.msra.mxu0 0.0
    %390 = vmatpush.msra.mxu0 0.0
    %391 = vmatpush.msra.mxu0 0.0
    %392 = vmatpush.msra.mxu0 0.0
    %393 = vmatpush.msra.mxu0 0.0
    %394 = vmatpush.msra.mxu0 0.0
    %395 = vmatpush.msra.mxu0 0.0
    %396 = vmatpush.msra.mxu0 0.0
    %397 = vmatpush.msra.mxu0 0.0
    %398 = vmatpush.msra.mxu0 0.0
    %399 = vmatpush.msra.mxu0 0.0
    %400 = vmatpush.msra.mxu0 0.0
    %401 = vmatpush.msra.mxu0 %v60
    %402 = vmatpush.msra.mxu0 %v59
    %403 = vmatpush.msra.mxu0 %v58
    %404 = vmatpush.msra.mxu0 %v57
    %405 = vmatmul.f32.gmra.mxu0 %v387
    %v406 = vpop.f32.mrf.mxu0
    %v407 = vadd.f32 %v73, %v406
    %408 = vdwg.mxu0
    %v409 = vtanh.pop %v407
    %411 = vrot.lane.b32.xlu0 %v240, 104
    %v412 = vpop.permute.xlu0 %411
    %415 = vrot.lane.b32.xlu0 %v348, 8
    %v416 = vpop.permute.xlu0 %415
    %vm418 = vcmask 64512
    %v419 = vsel %vm418, %v409, %v412
    %vm420 = vcmask 326656
    %v421 = vsel %vm420, %v419, %v416
    %v423 = vsel %vm155, %v421, 0
    %425 = vmatpush.msra.mxu0 0.0
    %426 = vmatpush.msra.mxu0 0.0
    %427 = vmatpush.msra.mxu0 0.0
    %428 = vmatpush.msra.mxu0 0.0
    %429 = vmatpush.msra.mxu0 0.0
    %430 = vmatpush.msra.mxu0 0.0
    %431 = vmatpush.msra.mxu0 0.0
    %432 = vmatpush.msra.mxu0 %v49
    %433 = vmatpush.msra.mxu0 %v47
    %434 = vmatpush.msra.mxu0 %v45
    %435 = vmatpush.msra.mxu0 %v43
    %436 = vmatpush.msra.mxu0 %v41
    %437 = vmatpush.msra.mxu0 %v39
    %438 = vmatpush.msra.mxu0 %v37
    %439 = vmatpush.msra.mxu0 %v35
    %440 = vmatpush.msra.mxu0 %v33
    %441 = vmatmul.f32.gmra.mxu0 %v423
    %v442 = vpop.f32.mrf.mxu0
    %v443 = vadd.f32 0.0, %v442
    %444 = vdwg.mxu0
    %445 = vmatpush.msra.mxu0 0.0
    %446 = vmatpush.msra.mxu0 0.0
    %447 = vmatpush.msra.mxu0 0.0
    %448 = vmatpush.msra.mxu0 0.0
    %449 = vmatpush.msra.mxu0 0.0
    %450 = vmatpush.msra.mxu0 0.0
    %451 = vmatpush.msra.mxu0 0.0
    %452 = vmatpush.msra.mxu0 %v50
    %453 = vmatpush.msra.mxu0 %v48
    %454 = vmatpush.msra.mxu0 %v46
    %455 = vmatpush.msra.mxu0 %v44
    %456 = vmatpush.msra.mxu0 %v42
    %457 = vmatpush.msra.mxu0 %v40
    %458 = vmatpush.msra.mxu0 %v38
    %459 = vmatpush.msra.mxu0 %v36
    %460 = vmatpush.msra.mxu0 %v34
    %461 = vmatmul.f32.gmra.mxu0 %v423
    %v462 = vpop.f32.mrf.mxu0
    %v463 = vadd.f32 0.0, %v462
    %464 = vdwg.mxu0
    %v465 = vadd.f32 %v133, %v443
    %467 = vrot.lane.b32.xlu0 %v275, 64
    %v468 = vpop.permute.xlu0 %467
    %v470 = vsel %vm206, %v278, %v468
    %v471 = vmul.f32 %v470, %v65
    %v472 = vadd.f32 %v465, %v471
    %v473 = vxor.u32 %v472, 2147483648
    %v474 = vmul.f32 %v473, 1.442695
    %v475 = vpow.pop %v474
    %v476 = vadd.f32 %v475, 1.0
    %v477 = vrcp.pop %v476
    %v478 = vmul.f32 %v476, %v477
    %v479 = vsub.f32 1.0, %v478
    %v480 = vmul.f32 %v477, %v479
    %v481 = vadd.f32 %v477, %v480
    %vm482 = vweird.f32 %v476
    %vm483 = vweird.f32 %v477
    %vm484 = vmor %vm482, %vm483
    %v485 = vsel %vm484, %v477, %v481
    %v486 = vand.u32 2147483647, %v476
    %vm487 = vcmp.eq.f32.partialorder %v486, 8.507059e+37
    %v488 = vand.u32 %v476, 2147483648
    %v489 = vor.u32 1.1754944e-38, %v488
    %v490 = vsel %vm487, %v489, %v485
    %v491 = vmul.f32 1.0, %v490
    %v492 = vmul.f32 %v491, %v468
    %v493 = vtanh.pop %v465
    %495 = vrot.lane.b32.xlu0 %v493, 64
    %v496 = vpop.permute.xlu0 %495
    %v498 = vmul.f32 %v491, %v496
    %500 = vrot.lane.b32.xlu0 %v498, 32
    %v501 = vpop.permute.xlu0 %500
    %v503 = vadd.f32 %v492, %v501
    %v504 = vmul.f32 %v503, %v243
    %506 = vrot.lane.b32.xlu0 %v504, 64
    %v507 = vpop.permute.xlu0 %506
    %v509 = vadd.f32 %v465, %v507
    %v510 = vxor.u32 %v509, 2147483648
    %v511 = vmul.f32 %v510, 1.442695
    %v512 = vpow.pop %v511
    %v513 = vadd.f32 %v512, 1.0
    %v514 = vrcp.pop %v513
    %v515 = vmul.f32 %v513, %v514
    %v516 = vsub.f32 1.0, %v515
    %v517 = vmul.f32 %v514, %v516
    %v518 = vadd.f32 %v514, %v517
    %vm519 = vweird.f32 %v513
    %vm520 = vweird.f32 %v514
    %vm521 = vmor %vm519, %vm520
    %v522 = vsel %vm521, %v514, %v518
    %v523 = vand.u32 2147483647, %v513
    %vm524 = vcmp.eq.f32.partialorder %v523, 8.507059e+37
    %v525 = vand.u32 %v513, 2147483648
    %v526 = vor.u32 1.1754944e-38, %v525
    %v527 = vsel %vm524, %v526, %v522
    %v528 = vmul.f32 1.0, %v527
    %v529 = vtanh.pop %v503
    %531 = vrot.lane.b32.xlu0 %v529, 64
    %v532 = vpop.permute.xlu0 %531
    %v534 = vmul.f32 %v528, %v532
    %536 = vrot.lane.b32.xlu0 %v534, 32
    %v537 = vpop.permute.xlu0 %536
    %v538 = vsel %vm206, %v537, 0
    %540 = vmatpush.msra.mxu0 0.0
    %541 = vmatpush.msra.mxu0 0.0
    %542 = vmatpush.msra.mxu0 0.0
    %543 = vmatpush.msra.mxu0 0.0
    %544 = vmatpush.msra.mxu0 0.0
    %545 = vmatpush.msra.mxu0 0.0
    %546 = vmatpush.msra.mxu0 0.0
    %547 = vmatpush.msra.mxu0 0.0
    %548 = vmatpush.msra.mxu0 0.0
    %549 = vmatpush.msra.mxu0 0.0
    %550 = vmatpush.msra.mxu0 0.0
    %551 = vmatpush.msra.mxu0 0.0
    %552 = vmatpush.msra.mxu0 %v54
    %553 = vmatpush.msra.mxu0 %v53
    %554 = vmatpush.msra.mxu0 %v52
    %555 = vmatpush.msra.mxu0 %v51
    %556 = vmatmul.f32.gmra.mxu0 %v538
    %v557 = vpop.f32.mrf.mxu0
    %v558 = vadd.f32 %v463, %v557
    %559 = vdwg.mxu0
    %v560 = vadd.f32 %v558, %v63
    %562 = vrot.lane.b32.xlu0 %v383, 64
    %v563 = vpop.permute.xlu0 %562
    %v565 = vsel %vm206, %v386, %v563
    %v566 = vmul.f32 %v565, %v69
    %v567 = vadd.f32 %v560, %v566
    %v568 = vxor.u32 %v567, 2147483648
    %v569 = vmul.f32 %v568, 1.442695
    %v570 = vpow.pop %v569
    %v571 = vadd.f32 %v570, 1.0
    %v572 = vrcp.pop %v571
    %v573 = vmul.f32 %v571, %v572
    %v574 = vsub.f32 1.0, %v573
    %v575 = vmul.f32 %v572, %v574
    %v576 = vadd.f32 %v572, %v575
    %vm577 = vweird.f32 %v571
    %vm578 = vweird.f32 %v572
    %vm579 = vmor %vm577, %vm578
    %v580 = vsel %vm579, %v572, %v576
    %v581 = vand.u32 2147483647, %v571
    %vm582 = vcmp.eq.f32.partialorder %v581, 8.507059e+37
    %v583 = vand.u32 %v571, 2147483648
    %v584 = vor.u32 1.1754944e-38, %v583
    %v585 = vsel %vm582, %v584, %v580
    %v586 = vmul.f32 1.0, %v585
    %v587 = vmul.f32 %v586, %v563
    %v588 = vtanh.pop %v560
    %590 = vrot.lane.b32.xlu0 %v588, 64
    %v591 = vpop.permute.xlu0 %590
    %v593 = vmul.f32 %v586, %v591
    %595 = vrot.lane.b32.xlu0 %v593, 32
    %v596 = vpop.permute.xlu0 %595
    %v598 = vadd.f32 %v587, %v596
    %v599 = vmul.f32 %v598, %v351
    %601 = vrot.lane.b32.xlu0 %v599, 64
    %v602 = vpop.permute.xlu0 %601
    %v604 = vadd.f32 %v560, %v602
    %v605 = vxor.u32 %v604, 2147483648
    %v606 = vmul.f32 %v605, 1.442695
    %v607 = vpow.pop %v606
    %v608 = vadd.f32 %v607, 1.0
    %v609 = vrcp.pop %v608
    %v610 = vmul.f32 %v608, %v609
    %v611 = vsub.f32 1.0, %v610
    %v612 = vmul.f32 %v609, %v611
    %v613 = vadd.f32 %v609, %v612
    %vm614 = vweird.f32 %v608
    %vm615 = vweird.f32 %v609
    %vm616 = vmor %vm614, %vm615
    %v617 = vsel %vm616, %v609, %v613
    %v618 = vand.u32 2147483647, %v608
    %vm619 = vcmp.eq.f32.partialorder %v618, 8.507059e+37
    %v620 = vand.u32 %v608, 2147483648
    %v621 = vor.u32 1.1754944e-38, %v620
    %v622 = vsel %vm619, %v621, %v617
    %v623 = vmul.f32 1.0, %v622
    %v624 = vtanh.pop %v598
    %626 = vrot.lane.b32.xlu0 %v624, 64
    %v627 = vpop.permute.xlu0 %626
    %v629 = vmul.f32 %v623, %v627
    %631 = vrot.lane.b32.xlu0 %v629, 32
    %v632 = vpop.permute.xlu0 %631
    %v633 = vsel %vm206, %v632, 0
    %635 = vmatpush.msra.mxu0 0.0
    %636 = vmatpush.msra.mxu0 0.0
    %637 = vmatpush.msra.mxu0 0.0
    %638 = vmatpush.msra.mxu0 0.0
    %639 = vmatpush.msra.mxu0 0.0
    %640 = vmatpush.msra.mxu0 0.0
    %641 = vmatpush.msra.mxu0 0.0
    %642 = vmatpush.msra.mxu0 0.0
    %643 = vmatpush.msra.mxu0 0.0
    %644 = vmatpush.msra.mxu0 0.0
    %645 = vmatpush.msra.mxu0 0.0
    %646 = vmatpush.msra.mxu0 0.0
    %647 = vmatpush.msra.mxu0 %v60
    %648 = vmatpush.msra.mxu0 %v59
    %649 = vmatpush.msra.mxu0 %v58
    %650 = vmatpush.msra.mxu0 %v57
    %651 = vmatmul.f32.gmra.mxu0 %v633
    %v652 = vpop.f32.mrf.mxu0
    %v653 = vadd.f32 %v73, %v652
    %654 = vdwg.mxu0
    %v655 = vtanh.pop %v653
    %657 = vrot.lane.b32.xlu0 %v503, 104
    %v658 = vpop.permute.xlu0 %657
    %661 = vrot.lane.b32.xlu0 %v598, 8
    %v662 = vpop.permute.xlu0 %661
    %v664 = vsel %vm418, %v655, %v658
    %v665 = vsel %vm420, %v664, %v662
    %v667 = vsel %vm155, %v665, 0
    %669 = vmatpush.msra.mxu0 0.0
    %670 = vmatpush.msra.mxu0 0.0
    %671 = vmatpush.msra.mxu0 0.0
    %672 = vmatpush.msra.mxu0 0.0
    %673 = vmatpush.msra.mxu0 0.0
    %674 = vmatpush.msra.mxu0 0.0
    %675 = vmatpush.msra.mxu0 0.0
    %676 = vmatpush.msra.mxu0 %v49
    %677 = vmatpush.msra.mxu0 %v47
    %678 = vmatpush.msra.mxu0 %v45
    %679 = vmatpush.msra.mxu0 %v43
    %680 = vmatpush.msra.mxu0 %v41
    %681 = vmatpush.msra.mxu0 %v39
    %682 = vmatpush.msra.mxu0 %v37
    %683 = vmatpush.msra.mxu0 %v35
    %684 = vmatpush.msra.mxu0 %v33
    %685 = vmatmul.f32.gmra.mxu0 %v667
    %v686 = vpop.f32.mrf.mxu0
    %v687 = vadd.f32 0.0, %v686
    %688 = vdwg.mxu0
    %689 = vmatpush.msra.mxu0 0.0
    %690 = vmatpush.msra.mxu0 0.0
    %691 = vmatpush.msra.mxu0 0.0
    %692 = vmatpush.msra.mxu0 0.0
    %693 = vmatpush.msra.mxu0 0.0
    %694 = vmatpush.msra.mxu0 0.0
    %695 = vmatpush.msra.mxu0 0.0
    %696 = vmatpush.msra.mxu0 %v50
    %697 = vmatpush.msra.mxu0 %v48
    %698 = vmatpush.msra.mxu0 %v46
    %699 = vmatpush.msra.mxu0 %v44
    %700 = vmatpush.msra.mxu0 %v42
    %701 = vmatpush.msra.mxu0 %v40
    %702 = vmatpush.msra.mxu0 %v38
    %703 = vmatpush.msra.mxu0 %v36
    %704 = vmatpush.msra.mxu0 %v34
    %705 = vmatmul.f32.gmra.mxu0 %v667
    %v706 = vpop.f32.mrf.mxu0
    %v707 = vadd.f32 0.0, %v706
    %708 = vdwg.mxu0
    %v709 = vadd.f32 %v136, %v687
    %711 = vrot.lane.b32.xlu0 %v534, 64
    %v712 = vpop.permute.xlu0 %711
    %v714 = vsel %vm206, %v537, %v712
    %v715 = vmul.f32 %v714, %v65
    %v716 = vadd.f32 %v709, %v715
    %v717 = vxor.u32 %v716, 2147483648
    %v718 = vmul.f32 %v717, 1.442695
    %v719 = vpow.pop %v718
    %v720 = vadd.f32 %v719, 1.0
    %v721 = vrcp.pop %v720
    %v722 = vmul.f32 %v720, %v721
    %v723 = vsub.f32 1.0, %v722
    %v724 = vmul.f32 %v721, %v723
    %v725 = vadd.f32 %v721, %v724
    %vm726 = vweird.f32 %v720
    %vm727 = vweird.f32 %v721
    %vm728 = vmor %vm726, %vm727
    %v729 = vsel %vm728, %v721, %v725
    %v730 = vand.u32 2147483647, %v720
    %vm731 = vcmp.eq.f32.partialorder %v730, 8.507059e+37
    %v732 = vand.u32 %v720, 2147483648
    %v733 = vor.u32 1.1754944e-38, %v732
    %v734 = vsel %vm731, %v733, %v729
    %v735 = vmul.f32 1.0, %v734
    %v736 = vmul.f32 %v735, %v712
    %v737 = vtanh.pop %v709
    %739 = vrot.lane.b32.xlu0 %v737, 64
    %v740 = vpop.permute.xlu0 %739
    %v742 = vmul.f32 %v735, %v740
    %744 = vrot.lane.b32.xlu0 %v742, 32
    %v745 = vpop.permute.xlu0 %744
    %v747 = vadd.f32 %v736, %v745
    %v748 = vmul.f32 %v747, %v243
    %750 = vrot.lane.b32.xlu0 %v748, 64
    %v751 = vpop.permute.xlu0 %750
    %v753 = vadd.f32 %v709, %v751
    %v754 = vxor.u32 %v753, 2147483648
    %v755 = vmul.f32 %v754, 1.442695
    %v756 = vpow.pop %v755
    %v757 = vadd.f32 %v756, 1.0
    %v758 = vrcp.pop %v757
    %v759 = vmul.f32 %v757, %v758
    %v760 = vsub.f32 1.0, %v759
    %v761 = vmul.f32 %v758, %v760
    %v762 = vadd.f32 %v758, %v761
    %vm763 = vweird.f32 %v757
    %vm764 = vweird.f32 %v758
    %vm765 = vmor %vm763, %vm764
    %v766 = vsel %vm765, %v758, %v762
    %v767 = vand.u32 2147483647, %v757
    %vm768 = vcmp.eq.f32.partialorder %v767, 8.507059e+37
    %v769 = vand.u32 %v757, 2147483648
    %v770 = vor.u32 1.1754944e-38, %v769
    %v771 = vsel %vm768, %v770, %v766
    %v772 = vmul.f32 1.0, %v771
    %v773 = vtanh.pop %v747
    %775 = vrot.lane.b32.xlu0 %v773, 64
    %v776 = vpop.permute.xlu0 %775
    %v778 = vmul.f32 %v772, %v776
    %780 = vrot.lane.b32.xlu0 %v778, 32
    %v781 = vpop.permute.xlu0 %780
    %v782 = vsel %vm206, %v781, 0
    %784 = vmatpush.msra.mxu0 0.0
    %785 = vmatpush.msra.mxu0 0.0
    %786 = vmatpush.msra.mxu0 0.0
    %787 = vmatpush.msra.mxu0 0.0
    %788 = vmatpush.msra.mxu0 0.0
    %789 = vmatpush.msra.mxu0 0.0
    %790 = vmatpush.msra.mxu0 0.0
    %791 = vmatpush.msra.mxu0 0.0
    %792 = vmatpush.msra.mxu0 0.0
    %793 = vmatpush.msra.mxu0 0.0
    %794 = vmatpush.msra.mxu0 0.0
    %795 = vmatpush.msra.mxu0 0.0
    %796 = vmatpush.msra.mxu0 %v54
    %797 = vmatpush.msra.mxu0 %v53
    %798 = vmatpush.msra.mxu0 %v52
    %799 = vmatpush.msra.mxu0 %v51
    %800 = vmatmul.f32.gmra.mxu0 %v782
    %v801 = vpop.f32.mrf.mxu0
    %v802 = vadd.f32 %v707, %v801
    %803 = vdwg.mxu0
    %v804 = vadd.f32 %v802, %v63
    %806 = vrot.lane.b32.xlu0 %v629, 64
    %v807 = vpop.permute.xlu0 %806
    %v809 = vsel %vm206, %v632, %v807
    %v810 = vmul.f32 %v809, %v69
    %v811 = vadd.f32 %v804, %v810
    %v812 = vxor.u32 %v811, 2147483648
    %v813 = vmul.f32 %v812, 1.442695
    %v814 = vpow.pop %v813
    %v815 = vadd.f32 %v814, 1.0
    %v816 = vrcp.pop %v815
    %v817 = vmul.f32 %v815, %v816
    %v818 = vsub.f32 1.0, %v817
    %v819 = vmul.f32 %v816, %v818
    %v820 = vadd.f32 %v816, %v819
    %vm821 = vweird.f32 %v815
    %vm822 = vweird.f32 %v816
    %vm823 = vmor %vm821, %vm822
    %v824 = vsel %vm823, %v816, %v820
    %v825 = vand.u32 2147483647, %v815
    %vm826 = vcmp.eq.f32.partialorder %v825, 8.507059e+37
    %v827 = vand.u32 %v815, 2147483648
    %v828 = vor.u32 1.1754944e-38, %v827
    %v829 = vsel %vm826, %v828, %v824
    %v830 = vmul.f32 1.0, %v829
    %v831 = vmul.f32 %v830, %v807
    %v832 = vtanh.pop %v804
    %834 = vrot.lane.b32.xlu0 %v832, 64
    %v835 = vpop.permute.xlu0 %834
    %v837 = vmul.f32 %v830, %v835
    %839 = vrot.lane.b32.xlu0 %v837, 32
    %v840 = vpop.permute.xlu0 %839
    %v842 = vadd.f32 %v831, %v840
    %v843 = vmul.f32 %v842, %v351
    %845 = vrot.lane.b32.xlu0 %v843, 64
    %v846 = vpop.permute.xlu0 %845
    %v848 = vadd.f32 %v804, %v846
    %v849 = vxor.u32 %v848, 2147483648
    %v850 = vmul.f32 %v849, 1.442695
    %v851 = vpow.pop %v850
    %v852 = vadd.f32 %v851, 1.0
    %v853 = vrcp.pop %v852
    %v854 = vmul.f32 %v852, %v853
    %v855 = vsub.f32 1.0, %v854
    %v856 = vmul.f32 %v853, %v855
    %v857 = vadd.f32 %v853, %v856
    %vm858 = vweird.f32 %v852
    %vm859 = vweird.f32 %v853
    %vm860 = vmor %vm858, %vm859
    %v861 = vsel %vm860, %v853, %v857
    %v862 = vand.u32 2147483647, %v852
    %vm863 = vcmp.eq.f32.partialorder %v862, 8.507059e+37
    %v864 = vand.u32 %v852, 2147483648
    %v865 = vor.u32 1.1754944e-38, %v864
    %v866 = vsel %vm863, %v865, %v861
    %v867 = vmul.f32 1.0, %v866
    %v868 = vtanh.pop %v842
    %870 = vrot.lane.b32.xlu0 %v868, 64
    %v871 = vpop.permute.xlu0 %870
    %v873 = vmul.f32 %v867, %v871
    %875 = vrot.lane.b32.xlu0 %v873, 32
    %v876 = vpop.permute.xlu0 %875
    %v877 = vsel %vm206, %v876, 0
    %879 = vmatpush.msra.mxu0 0.0
    %880 = vmatpush.msra.mxu0 0.0
    %881 = vmatpush.msra.mxu0 0.0
    %882 = vmatpush.msra.mxu0 0.0
    %883 = vmatpush.msra.mxu0 0.0
    %884 = vmatpush.msra.mxu0 0.0
    %885 = vmatpush.msra.mxu0 0.0
    %886 = vmatpush.msra.mxu0 0.0
    %887 = vmatpush.msra.mxu0 0.0
    %888 = vmatpush.msra.mxu0 0.0
    %889 = vmatpush.msra.mxu0 0.0
    %890 = vmatpush.msra.mxu0 0.0
    %891 = vmatpush.msra.mxu0 %v60
    %892 = vmatpush.msra.mxu0 %v59
    %893 = vmatpush.msra.mxu0 %v58
    %894 = vmatpush.msra.mxu0 %v57
    %895 = vmatmul.f32.gmra.mxu0 %v877
    %v896 = vpop.f32.mrf.mxu0
    %v897 = vadd.f32 %v73, %v896
    %898 = vdwg.mxu0
    %v899 = vtanh.pop %v897
    %901 = vrot.lane.b32.xlu0 %v747, 104
    %v902 = vpop.permute.xlu0 %901
    %905 = vrot.lane.b32.xlu0 %v842, 8
    %v906 = vpop.permute.xlu0 %905
    %v908 = vsel %vm418, %v899, %v902
    %v909 = vsel %vm420, %v908, %v906
    %v911 = vsel %vm155, %v909, 0
    %913 = vmatpush.msra.mxu0 0.0
    %914 = vmatpush.msra.mxu0 0.0
    %915 = vmatpush.msra.mxu0 0.0
    %916 = vmatpush.msra.mxu0 0.0
    %917 = vmatpush.msra.mxu0 0.0
    %918 = vmatpush.msra.mxu0 0.0
    %919 = vmatpush.msra.mxu0 0.0
    %920 = vmatpush.msra.mxu0 %v49
    %921 = vmatpush.msra.mxu0 %v47
    %922 = vmatpush.msra.mxu0 %v45
    %923 = vmatpush.msra.mxu0 %v43
    %924 = vmatpush.msra.mxu0 %v41
    %925 = vmatpush.msra.mxu0 %v39
    %926 = vmatpush.msra.mxu0 %v37
    %927 = vmatpush.msra.mxu0 %v35
    %928 = vmatpush.msra.mxu0 %v33
    %929 = vmatmul.f32.gmra.mxu0 %v911
    %v930 = vpop.f32.mrf.mxu0
    %v931 = vadd.f32 0.0, %v930
    %932 = vdwg.mxu0
    %933 = vmatpush.msra.mxu0 0.0
    %934 = vmatpush.msra.mxu0 0.0
    %935 = vmatpush.msra.mxu0 0.0
    %936 = vmatpush.msra.mxu0 0.0
    %937 = vmatpush.msra.mxu0 0.0
    %938 = vmatpush.msra.mxu0 0.0
    %939 = vmatpush.msra.mxu0 0.0
    %940 = vmatpush.msra.mxu0 %v50
    %941 = vmatpush.msra.mxu0 %v48
    %942 = vmatpush.msra.mxu0 %v46
    %943 = vmatpush.msra.mxu0 %v44
    %944 = vmatpush.msra.mxu0 %v42
    %945 = vmatpush.msra.mxu0 %v40
    %946 = vmatpush.msra.mxu0 %v38
    %947 = vmatpush.msra.mxu0 %v36
    %948 = vmatpush.msra.mxu0 %v34
    %949 = vmatmul.f32.gmra.mxu0 %v911
    %v950 = vpop.f32.mrf.mxu0
    %v951 = vadd.f32 0.0, %v950
    %952 = vdwg.mxu0
    %v953 = vadd.f32 %v139, %v931
    %955 = vrot.lane.b32.xlu0 %v778, 64
    %v956 = vpop.permute.xlu0 %955
    %v958 = vsel %vm206, %v781, %v956
    %v959 = vmul.f32 %v958, %v65
    %v960 = vadd.f32 %v953, %v959
    %v961 = vxor.u32 %v960, 2147483648
    %v962 = vmul.f32 %v961, 1.442695
    %v963 = vpow.pop %v962
    %v964 = vadd.f32 %v963, 1.0
    %v965 = vrcp.pop %v964
    %v966 = vmul.f32 %v964, %v965
    %v967 = vsub.f32 1.0, %v966
    %v968 = vmul.f32 %v965, %v967
    %v969 = vadd.f32 %v965, %v968
    %vm970 = vweird.f32 %v964
    %vm971 = vweird.f32 %v965
    %vm972 = vmor %vm970, %vm971
    %v973 = vsel %vm972, %v965, %v969
    %v974 = vand.u32 2147483647, %v964
    %vm975 = vcmp.eq.f32.partialorder %v974, 8.507059e+37
    %v976 = vand.u32 %v964, 2147483648
    %v977 = vor.u32 1.1754944e-38, %v976
    %v978 = vsel %vm975, %v977, %v973
    %v979 = vmul.f32 1.0, %v978
    %v980 = vmul.f32 %v979, %v956
    %v981 = vtanh.pop %v953
    %983 = vrot.lane.b32.xlu0 %v981, 64
    %v984 = vpop.permute.xlu0 %983
    %v986 = vmul.f32 %v979, %v984
    %988 = vrot.lane.b32.xlu0 %v986, 32
    %v989 = vpop.permute.xlu0 %988
    %v991 = vadd.f32 %v980, %v989
    %v992 = vmul.f32 %v991, %v243
    %994 = vrot.lane.b32.xlu0 %v992, 64
    %v995 = vpop.permute.xlu0 %994
    %v997 = vadd.f32 %v953, %v995
    %v998 = vxor.u32 %v997, 2147483648
    %v999 = vmul.f32 %v998, 1.442695
    %v1000 = vpow.pop %v999
    %v1001 = vadd.f32 %v1000, 1.0
    %v1002 = vrcp.pop %v1001
    %v1003 = vmul.f32 %v1001, %v1002
    %v1004 = vsub.f32 1.0, %v1003
    %v1005 = vmul.f32 %v1002, %v1004
    %v1006 = vadd.f32 %v1002, %v1005
    %vm1007 = vweird.f32 %v1001
    %vm1008 = vweird.f32 %v1002
    %vm1009 = vmor %vm1007, %vm1008
    %v1010 = vsel %vm1009, %v1002, %v1006
    %v1011 = vand.u32 2147483647, %v1001
    %vm1012 = vcmp.eq.f32.partialorder %v1011, 8.507059e+37
    %v1013 = vand.u32 %v1001, 2147483648
    %v1014 = vor.u32 1.1754944e-38, %v1013
    %v1015 = vsel %vm1012, %v1014, %v1010
    %v1016 = vmul.f32 1.0, %v1015
    %v1017 = vtanh.pop %v991
    %1019 = vrot.lane.b32.xlu0 %v1017, 64
    %v1020 = vpop.permute.xlu0 %1019
    %v1022 = vmul.f32 %v1016, %v1020
    %1024 = vrot.lane.b32.xlu0 %v1022, 32
    %v1025 = vpop.permute.xlu0 %1024
    %v1026 = vsel %vm206, %v1025, 0
    %1028 = vmatpush.msra.mxu0 0.0
    %1029 = vmatpush.msra.mxu0 0.0
    %1030 = vmatpush.msra.mxu0 0.0
    %1031 = vmatpush.msra.mxu0 0.0
    %1032 = vmatpush.msra.mxu0 0.0
    %1033 = vmatpush.msra.mxu0 0.0
    %1034 = vmatpush.msra.mxu0 0.0
    %1035 = vmatpush.msra.mxu0 0.0
    %1036 = vmatpush.msra.mxu0 0.0
    %1037 = vmatpush.msra.mxu0 0.0
    %1038 = vmatpush.msra.mxu0 0.0
    %1039 = vmatpush.msra.mxu0 0.0
    %1040 = vmatpush.msra.mxu0 %v54
    %1041 = vmatpush.msra.mxu0 %v53
    %1042 = vmatpush.msra.mxu0 %v52
    %1043 = vmatpush.msra.mxu0 %v51
    %1044 = vmatmul.f32.gmra.mxu0 %v1026
    %v1045 = vpop.f32.mrf.mxu0
    %v1046 = vadd.f32 %v951, %v1045
    %1047 = vdwg.mxu0
    %v1048 = vadd.f32 %v1046, %v63
    %1050 = vrot.lane.b32.xlu0 %v873, 64
    %v1051 = vpop.permute.xlu0 %1050
    %v1053 = vsel %vm206, %v876, %v1051
    %v1054 = vmul.f32 %v1053, %v69
    %v1055 = vadd.f32 %v1048, %v1054
    %v1056 = vxor.u32 %v1055, 2147483648
    %v1057 = vmul.f32 %v1056, 1.442695
    %v1058 = vpow.pop %v1057
    %v1059 = vadd.f32 %v1058, 1.0
    %v1060 = vrcp.pop %v1059
    %v1061 = vmul.f32 %v1059, %v1060
    %v1062 = vsub.f32 1.0, %v1061
    %v1063 = vmul.f32 %v1060, %v1062
    %v1064 = vadd.f32 %v1060, %v1063
    %vm1065 = vweird.f32 %v1059
    %vm1066 = vweird.f32 %v1060
    %vm1067 = vmor %vm1065, %vm1066
    %v1068 = vsel %vm1067, %v1060, %v1064
    %v1069 = vand.u32 2147483647, %v1059
    %vm1070 = vcmp.eq.f32.partialorder %v1069, 8.507059e+37
    %v1071 = vand.u32 %v1059, 2147483648
    %v1072 = vor.u32 1.1754944e-38, %v1071
    %v1073 = vsel %vm1070, %v1072, %v1068
    %v1074 = vmul.f32 1.0, %v1073
    %v1075 = vmul.f32 %v1074, %v1051
    %v1076 = vtanh.pop %v1048
    %1078 = vrot.lane.b32.xlu0 %v1076, 64
    %v1079 = vpop.permute.xlu0 %1078
    %v1081 = vmul.f32 %v1074, %v1079
    %1083 = vrot.lane.b32.xlu0 %v1081, 32
    %v1084 = vpop.permute.xlu0 %1083
    %v1086 = vadd.f32 %v1075, %v1084
    %v1087 = vmul.f32 %v1086, %v351
    %1089 = vrot.lane.b32.xlu0 %v1087, 64
    %v1090 = vpop.permute.xlu0 %1089
    %v1092 = vadd.f32 %v1048, %v1090
    %v1093 = vxor.u32 %v1092, 2147483648
    %v1094 = vmul.f32 %v1093, 1.442695
    %v1095 = vpow.pop %v1094
    %v1096 = vadd.f32 %v1095, 1.0
    %v1097 = vrcp.pop %v1096
    %v1098 = vmul.f32 %v1096, %v1097
    %v1099 = vsub.f32 1.0, %v1098
    %v1100 = vmul.f32 %v1097, %v1099
    %v1101 = vadd.f32 %v1097, %v1100
    %vm1102 = vweird.f32 %v1096
    %vm1103 = vweird.f32 %v1097
    %vm1104 = vmor %vm1102, %vm1103
    %v1105 = vsel %vm1104, %v1097, %v1101
    %v1106 = vand.u32 2147483647, %v1096
    %vm1107 = vcmp.eq.f32.partialorder %v1106, 8.507059e+37
    %v1108 = vand.u32 %v1096, 2147483648
    %v1109 = vor.u32 1.1754944e-38, %v1108
    %v1110 = vsel %vm1107, %v1109, %v1105
    %v1111 = vmul.f32 1.0, %v1110
    %v1112 = vtanh.pop %v1086
    %1114 = vrot.lane.b32.xlu0 %v1112, 64
    %v1115 = vpop.permute.xlu0 %1114
    %v1117 = vmul.f32 %v1111, %v1115
    %1119 = vrot.lane.b32.xlu0 %v1117, 32
    %v1120 = vpop.permute.xlu0 %1119
    %v1121 = vsel %vm206, %v1120, 0
    %1123 = vmatpush.msra.mxu0 0.0
    %1124 = vmatpush.msra.mxu0 0.0
    %1125 = vmatpush.msra.mxu0 0.0
    %1126 = vmatpush.msra.mxu0 0.0
    %1127 = vmatpush.msra.mxu0 0.0
    %1128 = vmatpush.msra.mxu0 0.0
    %1129 = vmatpush.msra.mxu0 0.0
    %1130 = vmatpush.msra.mxu0 0.0
    %1131 = vmatpush.msra.mxu0 0.0
    %1132 = vmatpush.msra.mxu0 0.0
    %1133 = vmatpush.msra.mxu0 0.0
    %1134 = vmatpush.msra.mxu0 0.0
    %1135 = vmatpush.msra.mxu0 %v60
    %1136 = vmatpush.msra.mxu0 %v59
    %1137 = vmatpush.msra.mxu0 %v58
    %1138 = vmatpush.msra.mxu0 %v57
    %1139 = vmatmul.f32.gmra.mxu0 %v1121
    %v1140 = vpop.f32.mrf.mxu0
    %v1141 = vadd.f32 %v73, %v1140
    %1142 = vdwg.mxu0
    %v1143 = vtanh.pop %v1141
    %1145 = vrot.lane.b32.xlu0 %v991, 104
    %v1146 = vpop.permute.xlu0 %1145
    %1149 = vrot.lane.b32.xlu0 %v1086, 8
    %v1150 = vpop.permute.xlu0 %1149
    %v1152 = vsel %vm418, %v1143, %v1146
    %v1153 = vsel %vm420, %v1152, %v1150
    %v1155 = vsel %vm155, %v1153, 0
    %1157 = vmatpush.msra.mxu0 0.0
    %1158 = vmatpush.msra.mxu0 0.0
    %1159 = vmatpush.msra.mxu0 0.0
    %1160 = vmatpush.msra.mxu0 0.0
    %1161 = vmatpush.msra.mxu0 0.0
    %1162 = vmatpush.msra.mxu0 0.0
    %1163 = vmatpush.msra.mxu0 0.0
    %1164 = vmatpush.msra.mxu0 %v49
    %1165 = vmatpush.msra.mxu0 %v47
    %1166 = vmatpush.msra.mxu0 %v45
    %1167 = vmatpush.msra.mxu0 %v43
    %1168 = vmatpush.msra.mxu0 %v41
    %1169 = vmatpush.msra.mxu0 %v39
    %1170 = vmatpush.msra.mxu0 %v37
    %1171 = vmatpush.msra.mxu0 %v35
    %1172 = vmatpush.msra.mxu0 %v33
    %1173 = vmatmul.f32.gmra.mxu0 %v1155
    %v1174 = vpop.f32.mrf.mxu0
    %v1175 = vadd.f32 0.0, %v1174
    %1176 = vdwg.mxu0
    %1177 = vmatpush.msra.mxu0 0.0
    %1178 = vmatpush.msra.mxu0 0.0
    %1179 = vmatpush.msra.mxu0 0.0
    %1180 = vmatpush.msra.mxu0 0.0
    %1181 = vmatpush.msra.mxu0 0.0
    %1182 = vmatpush.msra.mxu0 0.0
    %1183 = vmatpush.msra.mxu0 0.0
    %1184 = vmatpush.msra.mxu0 %v50
    %1185 = vmatpush.msra.mxu0 %v48
    %1186 = vmatpush.msra.mxu0 %v46
    %1187 = vmatpush.msra.mxu0 %v44
    %1188 = vmatpush.msra.mxu0 %v42
    %1189 = vmatpush.msra.mxu0 %v40
    %1190 = vmatpush.msra.mxu0 %v38
    %1191 = vmatpush.msra.mxu0 %v36
    %1192 = vmatpush.msra.mxu0 %v34
    %1193 = vmatmul.f32.gmra.mxu0 %v1155
    %v1194 = vpop.f32.mrf.mxu0
    %v1195 = vadd.f32 0.0, %v1194
    %1196 = vdwg.mxu0
    %v1197 = vadd.f32 %v142, %v1175
    %1199 = vrot.lane.b32.xlu0 %v1022, 64
    %v1200 = vpop.permute.xlu0 %1199
    %v1202 = vsel %vm206, %v1025, %v1200
    %v1203 = vmul.f32 %v1202, %v65
    %v1204 = vadd.f32 %v1197, %v1203
    %v1205 = vxor.u32 %v1204, 2147483648
    %v1206 = vmul.f32 %v1205, 1.442695
    %v1207 = vpow.pop %v1206
    %v1208 = vadd.f32 %v1207, 1.0
    %v1209 = vrcp.pop %v1208
    %v1210 = vmul.f32 %v1208, %v1209
    %v1211 = vsub.f32 1.0, %v1210
    %v1212 = vmul.f32 %v1209, %v1211
    %v1213 = vadd.f32 %v1209, %v1212
    %vm1214 = vweird.f32 %v1208
    %vm1215 = vweird.f32 %v1209
    %vm1216 = vmor %vm1214, %vm1215
    %v1217 = vsel %vm1216, %v1209, %v1213
    %v1218 = vand.u32 2147483647, %v1208
    %vm1219 = vcmp.eq.f32.partialorder %v1218, 8.507059e+37
    %v1220 = vand.u32 %v1208, 2147483648
    %v1221 = vor.u32 1.1754944e-38, %v1220
    %v1222 = vsel %vm1219, %v1221, %v1217
    %v1223 = vmul.f32 1.0, %v1222
    %v1224 = vmul.f32 %v1223, %v1200
    %v1225 = vtanh.pop %v1197
    %1227 = vrot.lane.b32.xlu0 %v1225, 64
    %v1228 = vpop.permute.xlu0 %1227
    %v1230 = vmul.f32 %v1223, %v1228
    %1232 = vrot.lane.b32.xlu0 %v1230, 32
    %v1233 = vpop.permute.xlu0 %1232
    %v1235 = vadd.f32 %v1224, %v1233
    %v1236 = vmul.f32 %v1235, %v243
    %1238 = vrot.lane.b32.xlu0 %v1236, 64
    %v1239 = vpop.permute.xlu0 %1238
    %v1241 = vadd.f32 %v1197, %v1239
    %v1242 = vxor.u32 %v1241, 2147483648
    %v1243 = vmul.f32 %v1242, 1.442695
    %v1244 = vpow.pop %v1243
    %v1245 = vadd.f32 %v1244, 1.0
    %v1246 = vrcp.pop %v1245
    %v1247 = vmul.f32 %v1245, %v1246
    %v1248 = vsub.f32 1.0, %v1247
    %v1249 = vmul.f32 %v1246, %v1248
    %v1250 = vadd.f32 %v1246, %v1249
    %vm1251 = vweird.f32 %v1245
    %vm1252 = vweird.f32 %v1246
    %vm1253 = vmor %vm1251, %vm1252
    %v1254 = vsel %vm1253, %v1246, %v1250
    %v1255 = vand.u32 2147483647, %v1245
    %vm1256 = vcmp.eq.f32.partialorder %v1255, 8.507059e+37
    %v1257 = vand.u32 %v1245, 2147483648
    %v1258 = vor.u32 1.1754944e-38, %v1257
    %v1259 = vsel %vm1256, %v1258, %v1254
    %v1260 = vmul.f32 1.0, %v1259
    %v1261 = vtanh.pop %v1235
    %1263 = vrot.lane.b32.xlu0 %v1261, 64
    %v1264 = vpop.permute.xlu0 %1263
    %v1266 = vmul.f32 %v1260, %v1264
    %1268 = vrot.lane.b32.xlu0 %v1266, 32
    %v1269 = vpop.permute.xlu0 %1268
    %v1270 = vsel %vm206, %v1269, 0
    %1272 = vmatpush.msra.mxu0 0.0
    %1273 = vmatpush.msra.mxu0 0.0
    %1274 = vmatpush.msra.mxu0 0.0
    %1275 = vmatpush.msra.mxu0 0.0
    %1276 = vmatpush.msra.mxu0 0.0
    %1277 = vmatpush.msra.mxu0 0.0
    %1278 = vmatpush.msra.mxu0 0.0
    %1279 = vmatpush.msra.mxu0 0.0
    %1280 = vmatpush.msra.mxu0 0.0
    %1281 = vmatpush.msra.mxu0 0.0
    %1282 = vmatpush.msra.mxu0 0.0
    %1283 = vmatpush.msra.mxu0 0.0
    %1284 = vmatpush.msra.mxu0 %v54
    %1285 = vmatpush.msra.mxu0 %v53
    %1286 = vmatpush.msra.mxu0 %v52
    %1287 = vmatpush.msra.mxu0 %v51
    %1288 = vmatmul.f32.gmra.mxu0 %v1270
    %v1289 = vpop.f32.mrf.mxu0
    %v1290 = vadd.f32 %v1195, %v1289
    %1291 = vdwg.mxu0
    %v1292 = vadd.f32 %v1290, %v63
    %1294 = vrot.lane.b32.xlu0 %v1117, 64
    %v1295 = vpop.permute.xlu0 %1294
    %v1297 = vsel %vm206, %v1120, %v1295
    %v1298 = vmul.f32 %v1297, %v69
    %v1299 = vadd.f32 %v1292, %v1298
    %v1300 = vxor.u32 %v1299, 2147483648
    %v1301 = vmul.f32 %v1300, 1.442695
    %v1302 = vpow.pop %v1301
    %v1303 = vadd.f32 %v1302, 1.0
    %v1304 = vrcp.pop %v1303
    %v1305 = vmul.f32 %v1303, %v1304
    %v1306 = vsub.f32 1.0, %v1305
    %v1307 = vmul.f32 %v1304, %v1306
    %v1308 = vadd.f32 %v1304, %v1307
    %vm1309 = vweird.f32 %v1303
    %vm1310 = vweird.f32 %v1304
    %vm1311 = vmor %vm1309, %vm1310
    %v1312 = vsel %vm1311, %v1304, %v1308
    %v1313 = vand.u32 2147483647, %v1303
    %vm1314 = vcmp.eq.f32.partialorder %v1313, 8.507059e+37
    %v1315 = vand.u32 %v1303, 2147483648
    %v1316 = vor.u32 1.1754944e-38, %v1315
    %v1317 = vsel %vm1314, %v1316, %v1312
    %v1318 = vmul.f32 1.0, %v1317
    %v1319 = vmul.f32 %v1318, %v1295
    %v1320 = vtanh.pop %v1292
    %1322 = vrot.lane.b32.xlu0 %v1320, 64
    %v1323 = vpop.permute.xlu0 %1322
    %v1325 = vmul.f32 %v1318, %v1323
    %1327 = vrot.lane.b32.xlu0 %v1325, 32
    %v1328 = vpop.permute.xlu0 %1327
    %v1330 = vadd.f32 %v1319, %v1328
    %v1331 = vmul.f32 %v1330, %v351
    %1333 = vrot.lane.b32.xlu0 %v1331, 64
    %v1334 = vpop.permute.xlu0 %1333
    %v1336 = vadd.f32 %v1292, %v1334
    %v1337 = vxor.u32 %v1336, 2147483648
    %v1338 = vmul.f32 %v1337, 1.442695
    %v1339 = vpow.pop %v1338
    %v1340 = vadd.f32 %v1339, 1.0
    %v1341 = vrcp.pop %v1340
    %v1342 = vmul.f32 %v1340, %v1341
    %v1343 = vsub.f32 1.0, %v1342
    %v1344 = vmul.f32 %v1341, %v1343
    %v1345 = vadd.f32 %v1341, %v1344
    %vm1346 = vweird.f32 %v1340
    %vm1347 = vweird.f32 %v1341
    %vm1348 = vmor %vm1346, %vm1347
    %v1349 = vsel %vm1348, %v1341, %v1345
    %v1350 = vand.u32 2147483647, %v1340
    %vm1351 = vcmp.eq.f32.partialorder %v1350, 8.507059e+37
    %v1352 = vand.u32 %v1340, 2147483648
    %v1353 = vor.u32 1.1754944e-38, %v1352
    %v1354 = vsel %vm1351, %v1353, %v1349
    %v1355 = vmul.f32 1.0, %v1354
    %v1356 = vtanh.pop %v1330
    %1358 = vrot.lane.b32.xlu0 %v1356, 64
    %v1359 = vpop.permute.xlu0 %1358
    %v1361 = vmul.f32 %v1355, %v1359
    %1363 = vrot.lane.b32.xlu0 %v1361, 32
    %v1364 = vpop.permute.xlu0 %1363
    %v1365 = vsel %vm206, %v1364, 0
    %1367 = vmatpush.msra.mxu0 0.0
    %1368 = vmatpush.msra.mxu0 0.0
    %1369 = vmatpush.msra.mxu0 0.0
    %1370 = vmatpush.msra.mxu0 0.0
    %1371 = vmatpush.msra.mxu0 0.0
    %1372 = vmatpush.msra.mxu0 0.0
    %1373 = vmatpush.msra.mxu0 0.0
    %1374 = vmatpush.msra.mxu0 0.0
    %1375 = vmatpush.msra.mxu0 0.0
    %1376 = vmatpush.msra.mxu0 0.0
    %1377 = vmatpush.msra.mxu0 0.0
    %1378 = vmatpush.msra.mxu0 0.0
    %1379 = vmatpush.msra.mxu0 %v60
    %1380 = vmatpush.msra.mxu0 %v59
    %1381 = vmatpush.msra.mxu0 %v58
    %1382 = vmatpush.msra.mxu0 %v57
    %1383 = vmatmul.f32.gmra.mxu0 %v1365
    %v1384 = vpop.f32.mrf.mxu0
    %v1385 = vadd.f32 %v73, %v1384
    %1386 = vdwg.mxu0
    %v1387 = vtanh.pop %v1385
    %1389 = vrot.lane.b32.xlu0 %v1235, 104
    %v1390 = vpop.permute.xlu0 %1389
    %1393 = vrot.lane.b32.xlu0 %v1330, 8
    %v1394 = vpop.permute.xlu0 %1393
    %v1396 = vsel %vm418, %v1387, %v1390
    %v1397 = vsel %vm420, %v1396, %v1394
    %v1399 = vsel %vm155, %v1397, 0
    %1401 = vmatpush.msra.mxu0 0.0
    %1402 = vmatpush.msra.mxu0 0.0
    %1403 = vmatpush.msra.mxu0 0.0
    %1404 = vmatpush.msra.mxu0 0.0
    %1405 = vmatpush.msra.mxu0 0.0
    %1406 = vmatpush.msra.mxu0 0.0
    %1407 = vmatpush.msra.mxu0 0.0
    %1408 = vmatpush.msra.mxu0 %v49
    %1409 = vmatpush.msra.mxu0 %v47
    %1410 = vmatpush.msra.mxu0 %v45
    %1411 = vmatpush.msra.mxu0 %v43
    %1412 = vmatpush.msra.mxu0 %v41
    %1413 = vmatpush.msra.mxu0 %v39
    %1414 = vmatpush.msra.mxu0 %v37
    %1415 = vmatpush.msra.mxu0 %v35
    %1416 = vmatpush.msra.mxu0 %v33
    %1417 = vmatmul.f32.gmra.mxu0 %v1399
    %v1418 = vpop.f32.mrf.mxu0
    %v1419 = vadd.f32 0.0, %v1418
    %1420 = vdwg.mxu0
    %1421 = vmatpush.msra.mxu0 0.0
    %1422 = vmatpush.msra.mxu0 0.0
    %1423 = vmatpush.msra.mxu0 0.0
    %1424 = vmatpush.msra.mxu0 0.0
    %1425 = vmatpush.msra.mxu0 0.0
    %1426 = vmatpush.msra.mxu0 0.0
    %1427 = vmatpush.msra.mxu0 0.0
    %1428 = vmatpush.msra.mxu0 %v50
    %1429 = vmatpush.msra.mxu0 %v48
    %1430 = vmatpush.msra.mxu0 %v46
    %1431 = vmatpush.msra.mxu0 %v44
    %1432 = vmatpush.msra.mxu0 %v42
    %1433 = vmatpush.msra.mxu0 %v40
    %1434 = vmatpush.msra.mxu0 %v38
    %1435 = vmatpush.msra.mxu0 %v36
    %1436 = vmatpush.msra.mxu0 %v34
    %1437 = vmatmul.f32.gmra.mxu0 %v1399
    %v1438 = vpop.f32.mrf.mxu0
    %v1439 = vadd.f32 0.0, %v1438
    %1440 = vdwg.mxu0
    %v1441 = vadd.f32 %v145, %v1419
    %1443 = vrot.lane.b32.xlu0 %v1266, 64
    %v1444 = vpop.permute.xlu0 %1443
    %v1446 = vsel %vm206, %v1269, %v1444
    %v1447 = vmul.f32 %v1446, %v65
    %v1448 = vadd.f32 %v1441, %v1447
    %v1449 = vxor.u32 %v1448, 2147483648
    %v1450 = vmul.f32 %v1449, 1.442695
    %v1451 = vpow.pop %v1450
    %v1452 = vadd.f32 %v1451, 1.0
    %v1453 = vrcp.pop %v1452
    %v1454 = vmul.f32 %v1452, %v1453
    %v1455 = vsub.f32 1.0, %v1454
    %v1456 = vmul.f32 %v1453, %v1455
    %v1457 = vadd.f32 %v1453, %v1456
    %vm1458 = vweird.f32 %v1452
    %vm1459 = vweird.f32 %v1453
    %vm1460 = vmor %vm1458, %vm1459
    %v1461 = vsel %vm1460, %v1453, %v1457
    %v1462 = vand.u32 2147483647, %v1452
    %vm1463 = vcmp.eq.f32.partialorder %v1462, 8.507059e+37
    %v1464 = vand.u32 %v1452, 2147483648
    %v1465 = vor.u32 1.1754944e-38, %v1464
    %v1466 = vsel %vm1463, %v1465, %v1461
    %v1467 = vmul.f32 1.0, %v1466
    %v1468 = vmul.f32 %v1467, %v1444
    %v1469 = vtanh.pop %v1441
    %1471 = vrot.lane.b32.xlu0 %v1469, 64
    %v1472 = vpop.permute.xlu0 %1471
    %v1474 = vmul.f32 %v1467, %v1472
    %1476 = vrot.lane.b32.xlu0 %v1474, 32
    %v1477 = vpop.permute.xlu0 %1476
    %v1479 = vadd.f32 %v1468, %v1477
    %v1480 = vmul.f32 %v1479, %v243
    %1482 = vrot.lane.b32.xlu0 %v1480, 64
    %v1483 = vpop.permute.xlu0 %1482
    %v1485 = vadd.f32 %v1441, %v1483
    %v1486 = vxor.u32 %v1485, 2147483648
    %v1487 = vmul.f32 %v1486, 1.442695
    %v1488 = vpow.pop %v1487
    %v1489 = vadd.f32 %v1488, 1.0
    %v1490 = vrcp.pop %v1489
    %v1491 = vmul.f32 %v1489, %v1490
    %v1492 = vsub.f32 1.0, %v1491
    %v1493 = vmul.f32 %v1490, %v1492
    %v1494 = vadd.f32 %v1490, %v1493
    %vm1495 = vweird.f32 %v1489
    %vm1496 = vweird.f32 %v1490
    %vm1497 = vmor %vm1495, %vm1496
    %v1498 = vsel %vm1497, %v1490, %v1494
    %v1499 = vand.u32 2147483647, %v1489
    %vm1500 = vcmp.eq.f32.partialorder %v1499, 8.507059e+37
    %v1501 = vand.u32 %v1489, 2147483648
    %v1502 = vor.u32 1.1754944e-38, %v1501
    %v1503 = vsel %vm1500, %v1502, %v1498
    %v1504 = vmul.f32 1.0, %v1503
    %v1505 = vtanh.pop %v1479
    %1507 = vrot.lane.b32.xlu0 %v1505, 64
    %v1508 = vpop.permute.xlu0 %1507
    %v1510 = vmul.f32 %v1504, %v1508
    %1512 = vrot.lane.b32.xlu0 %v1510, 32
    %v1513 = vpop.permute.xlu0 %1512
    %v1514 = vsel %vm206, %v1513, 0
    %1516 = vmatpush.msra.mxu0 0.0
    %1517 = vmatpush.msra.mxu0 0.0
    %1518 = vmatpush.msra.mxu0 0.0
    %1519 = vmatpush.msra.mxu0 0.0
    %1520 = vmatpush.msra.mxu0 0.0
    %1521 = vmatpush.msra.mxu0 0.0
    %1522 = vmatpush.msra.mxu0 0.0
    %1523 = vmatpush.msra.mxu0 0.0
    %1524 = vmatpush.msra.mxu0 0.0
    %1525 = vmatpush.msra.mxu0 0.0
    %1526 = vmatpush.msra.mxu0 0.0
    %1527 = vmatpush.msra.mxu0 0.0
    %1528 = vmatpush.msra.mxu0 %v54
    %1529 = vmatpush.msra.mxu0 %v53
    %1530 = vmatpush.msra.mxu0 %v52
    %1531 = vmatpush.msra.mxu0 %v51
    %1532 = vmatmul.f32.gmra.mxu0 %v1514
    %v1533 = vpop.f32.mrf.mxu0
    %v1534 = vadd.f32 %v1439, %v1533
    %1535 = vdwg.mxu0
    %v1536 = vadd.f32 %v1534, %v63
    %1538 = vrot.lane.b32.xlu0 %v1361, 64
    %v1539 = vpop.permute.xlu0 %1538
    %v1541 = vsel %vm206, %v1364, %v1539
    %v1542 = vmul.f32 %v1541, %v69
    %v1543 = vadd.f32 %v1536, %v1542
    %v1544 = vxor.u32 %v1543, 2147483648
    %v1545 = vmul.f32 %v1544, 1.442695
    %v1546 = vpow.pop %v1545
    %v1547 = vadd.f32 %v1546, 1.0
    %v1548 = vrcp.pop %v1547
    %v1549 = vmul.f32 %v1547, %v1548
    %v1550 = vsub.f32 1.0, %v1549
    %v1551 = vmul.f32 %v1548, %v1550
    %v1552 = vadd.f32 %v1548, %v1551
    %vm1553 = vweird.f32 %v1547
    %vm1554 = vweird.f32 %v1548
    %vm1555 = vmor %vm1553, %vm1554
    %v1556 = vsel %vm1555, %v1548, %v1552
    %v1557 = vand.u32 2147483647, %v1547
    %vm1558 = vcmp.eq.f32.partialorder %v1557, 8.507059e+37
    %v1559 = vand.u32 %v1547, 2147483648
    %v1560 = vor.u32 1.1754944e-38, %v1559
    %v1561 = vsel %vm1558, %v1560, %v1556
    %v1562 = vmul.f32 1.0, %v1561
    %v1563 = vmul.f32 %v1562, %v1539
    %v1564 = vtanh.pop %v1536
    %1566 = vrot.lane.b32.xlu0 %v1564, 64
    %v1567 = vpop.permute.xlu0 %1566
    %v1569 = vmul.f32 %v1562, %v1567
    %1571 = vrot.lane.b32.xlu0 %v1569, 32
    %v1572 = vpop.permute.xlu0 %1571
    %v1574 = vadd.f32 %v1563, %v1572
    %v1575 = vmul.f32 %v1574, %v351
    %1577 = vrot.lane.b32.xlu0 %v1575, 64
    %v1578 = vpop.permute.xlu0 %1577
    %v1580 = vadd.f32 %v1536, %v1578
    %v1581 = vxor.u32 %v1580, 2147483648
    %v1582 = vmul.f32 %v1581, 1.442695
    %v1583 = vpow.pop %v1582
    %v1584 = vadd.f32 %v1583, 1.0
    %v1585 = vrcp.pop %v1584
    %v1586 = vmul.f32 %v1584, %v1585
    %v1587 = vsub.f32 1.0, %v1586
    %v1588 = vmul.f32 %v1585, %v1587
    %v1589 = vadd.f32 %v1585, %v1588
    %vm1590 = vweird.f32 %v1584
    %vm1591 = vweird.f32 %v1585
    %vm1592 = vmor %vm1590, %vm1591
    %v1593 = vsel %vm1592, %v1585, %v1589
    %v1594 = vand.u32 2147483647, %v1584
    %vm1595 = vcmp.eq.f32.partialorder %v1594, 8.507059e+37
    %v1596 = vand.u32 %v1584, 2147483648
    %v1597 = vor.u32 1.1754944e-38, %v1596
    %v1598 = vsel %vm1595, %v1597, %v1593
    %v1599 = vmul.f32 1.0, %v1598
    %v1600 = vtanh.pop %v1574
    %1602 = vrot.lane.b32.xlu0 %v1600, 64
    %v1603 = vpop.permute.xlu0 %1602
    %v1605 = vmul.f32 %v1599, %v1603
    %1607 = vrot.lane.b32.xlu0 %v1605, 32
    %v1608 = vpop.permute.xlu0 %1607
    %v1609 = vsel %vm206, %v1608, 0
    %1611 = vmatpush.msra.mxu0 0.0
    %1612 = vmatpush.msra.mxu0 0.0
    %1613 = vmatpush.msra.mxu0 0.0
    %1614 = vmatpush.msra.mxu0 0.0
    %1615 = vmatpush.msra.mxu0 0.0
    %1616 = vmatpush.msra.mxu0 0.0
    %1617 = vmatpush.msra.mxu0 0.0
    %1618 = vmatpush.msra.mxu0 0.0
    %1619 = vmatpush.msra.mxu0 0.0
    %1620 = vmatpush.msra.mxu0 0.0
    %1621 = vmatpush.msra.mxu0 0.0
    %1622 = vmatpush.msra.mxu0 0.0
    %1623 = vmatpush.msra.mxu0 %v60
    %1624 = vmatpush.msra.mxu0 %v59
    %1625 = vmatpush.msra.mxu0 %v58
    %1626 = vmatpush.msra.mxu0 %v57
    %1627 = vmatmul.f32.gmra.mxu0 %v1609
    %v1628 = vpop.f32.mrf.mxu0
    %v1629 = vadd.f32 %v73, %v1628
    %1630 = vdwg.mxu0
    %v1631 = vtanh.pop %v1629
    %1633 = vrot.lane.b32.xlu0 %v1479, 104
    %v1634 = vpop.permute.xlu0 %1633
    %1637 = vrot.lane.b32.xlu0 %v1574, 8
    %v1638 = vpop.permute.xlu0 %1637
    %v1640 = vsel %vm418, %v1631, %v1634
    %v1641 = vsel %vm420, %v1640, %v1638
    %v1643 = vsel %vm155, %v1641, 0
    %1645 = vmatpush.msra.mxu0 0.0
    %1646 = vmatpush.msra.mxu0 0.0
    %1647 = vmatpush.msra.mxu0 0.0
    %1648 = vmatpush.msra.mxu0 0.0
    %1649 = vmatpush.msra.mxu0 0.0
    %1650 = vmatpush.msra.mxu0 0.0
    %1651 = vmatpush.msra.mxu0 0.0
    %1652 = vmatpush.msra.mxu0 %v49
    %1653 = vmatpush.msra.mxu0 %v47
    %1654 = vmatpush.msra.mxu0 %v45
    %1655 = vmatpush.msra.mxu0 %v43
    %1656 = vmatpush.msra.mxu0 %v41
    %1657 = vmatpush.msra.mxu0 %v39
    %1658 = vmatpush.msra.mxu0 %v37
    %1659 = vmatpush.msra.mxu0 %v35
    %1660 = vmatpush.msra.mxu0 %v33
    %1661 = vmatmul.f32.gmra.mxu0 %v1643
    %v1662 = vpop.f32.mrf.mxu0
    %v1663 = vadd.f32 0.0, %v1662
    %1664 = vdwg.mxu0
    %1665 = vmatpush.msra.mxu0 0.0
    %1666 = vmatpush.msra.mxu0 0.0
    %1667 = vmatpush.msra.mxu0 0.0
    %1668 = vmatpush.msra.mxu0 0.0
    %1669 = vmatpush.msra.mxu0 0.0
    %1670 = vmatpush.msra.mxu0 0.0
    %1671 = vmatpush.msra.mxu0 0.0
    %1672 = vmatpush.msra.mxu0 %v50
    %1673 = vmatpush.msra.mxu0 %v48
    %1674 = vmatpush.msra.mxu0 %v46
    %1675 = vmatpush.msra.mxu0 %v44
    %1676 = vmatpush.msra.mxu0 %v42
    %1677 = vmatpush.msra.mxu0 %v40
    %1678 = vmatpush.msra.mxu0 %v38
    %1679 = vmatpush.msra.mxu0 %v36
    %1680 = vmatpush.msra.mxu0 %v34
    %1681 = vmatmul.f32.gmra.mxu0 %v1643
    %v1682 = vpop.f32.mrf.mxu0
    %v1683 = vadd.f32 0.0, %v1682
    %1684 = vdwg.mxu0
    %v1685 = vadd.f32 %v148, %v1663
    %1687 = vrot.lane.b32.xlu0 %v1510, 64
    %v1688 = vpop.permute.xlu0 %1687
    %v1690 = vsel %vm206, %v1513, %v1688
    %v1691 = vmul.f32 %v1690, %v65
    %v1692 = vadd.f32 %v1685, %v1691
    %v1693 = vxor.u32 %v1692, 2147483648
    %v1694 = vmul.f32 %v1693, 1.442695
    %v1695 = vpow.pop %v1694
    %v1696 = vadd.f32 %v1695, 1.0
    %v1697 = vrcp.pop %v1696
    %v1698 = vmul.f32 %v1696, %v1697
    %v1699 = vsub.f32 1.0, %v1698
    %v1700 = vmul.f32 %v1697, %v1699
    %v1701 = vadd.f32 %v1697, %v1700
    %vm1702 = vweird.f32 %v1696
    %vm1703 = vweird.f32 %v1697
    %vm1704 = vmor %vm1702, %vm1703
    %v1705 = vsel %vm1704, %v1697, %v1701
    %v1706 = vand.u32 2147483647, %v1696
    %vm1707 = vcmp.eq.f32.partialorder %v1706, 8.507059e+37
    %v1708 = vand.u32 %v1696, 2147483648
    %v1709 = vor.u32 1.1754944e-38, %v1708
    %v1710 = vsel %vm1707, %v1709, %v1705
    %v1711 = vmul.f32 1.0, %v1710
    %v1712 = vmul.f32 %v1711, %v1688
    %v1713 = vtanh.pop %v1685
    %1715 = vrot.lane.b32.xlu0 %v1713, 64
    %v1716 = vpop.permute.xlu0 %1715
    %v1718 = vmul.f32 %v1711, %v1716
    %1720 = vrot.lane.b32.xlu0 %v1718, 32
    %v1721 = vpop.permute.xlu0 %1720
    %v1723 = vadd.f32 %v1712, %v1721
    %v1724 = vmul.f32 %v1723, %v243
    %1726 = vrot.lane.b32.xlu0 %v1724, 64
    %v1727 = vpop.permute.xlu0 %1726
    %v1729 = vadd.f32 %v1685, %v1727
    %v1730 = vxor.u32 %v1729, 2147483648
    %v1731 = vmul.f32 %v1730, 1.442695
    %v1732 = vpow.pop %v1731
    %v1733 = vadd.f32 %v1732, 1.0
    %v1734 = vrcp.pop %v1733
    %v1735 = vmul.f32 %v1733, %v1734
    %v1736 = vsub.f32 1.0, %v1735
    %v1737 = vmul.f32 %v1734, %v1736
    %v1738 = vadd.f32 %v1734, %v1737
    %vm1739 = vweird.f32 %v1733
    %vm1740 = vweird.f32 %v1734
    %vm1741 = vmor %vm1739, %vm1740
    %v1742 = vsel %vm1741, %v1734, %v1738
    %v1743 = vand.u32 2147483647, %v1733
    %vm1744 = vcmp.eq.f32.partialorder %v1743, 8.507059e+37
    %v1745 = vand.u32 %v1733, 2147483648
    %v1746 = vor.u32 1.1754944e-38, %v1745
    %v1747 = vsel %vm1744, %v1746, %v1742
    %v1748 = vmul.f32 1.0, %v1747
    %v1749 = vtanh.pop %v1723
    %1751 = vrot.lane.b32.xlu0 %v1749, 64
    %v1752 = vpop.permute.xlu0 %1751
    %v1754 = vmul.f32 %v1748, %v1752
    %1756 = vrot.lane.b32.xlu0 %v1754, 32
    %v1757 = vpop.permute.xlu0 %1756
    %v1758 = vsel %vm206, %v1757, 0
    %1760 = vmatpush.msra.mxu0 0.0
    %1761 = vmatpush.msra.mxu0 0.0
    %1762 = vmatpush.msra.mxu0 0.0
    %1763 = vmatpush.msra.mxu0 0.0
    %1764 = vmatpush.msra.mxu0 0.0
    %1765 = vmatpush.msra.mxu0 0.0
    %1766 = vmatpush.msra.mxu0 0.0
    %1767 = vmatpush.msra.mxu0 0.0
    %1768 = vmatpush.msra.mxu0 0.0
    %1769 = vmatpush.msra.mxu0 0.0
    %1770 = vmatpush.msra.mxu0 0.0
    %1771 = vmatpush.msra.mxu0 0.0
    %1772 = vmatpush.msra.mxu0 %v54
    %1773 = vmatpush.msra.mxu0 %v53
    %1774 = vmatpush.msra.mxu0 %v52
    %1775 = vmatpush.msra.mxu0 %v51
    %1776 = vmatmul.f32.gmra.mxu0 %v1758
    %v1777 = vpop.f32.mrf.mxu0
    %v1778 = vadd.f32 %v1683, %v1777
    %1779 = vdwg.mxu0
    %v1780 = vadd.f32 %v1778, %v63
    %1782 = vrot.lane.b32.xlu0 %v1605, 64
    %v1783 = vpop.permute.xlu0 %1782
    %v1785 = vsel %vm206, %v1608, %v1783
    %v1786 = vmul.f32 %v1785, %v69
    %v1787 = vadd.f32 %v1780, %v1786
    %v1788 = vxor.u32 %v1787, 2147483648
    %v1789 = vmul.f32 %v1788, 1.442695
    %v1790 = vpow.pop %v1789
    %v1791 = vadd.f32 %v1790, 1.0
    %v1792 = vrcp.pop %v1791
    %v1793 = vmul.f32 %v1791, %v1792
    %v1794 = vsub.f32 1.0, %v1793
    %v1795 = vmul.f32 %v1792, %v1794
    %v1796 = vadd.f32 %v1792, %v1795
    %vm1797 = vweird.f32 %v1791
    %vm1798 = vweird.f32 %v1792
    %vm1799 = vmor %vm1797, %vm1798
    %v1800 = vsel %vm1799, %v1792, %v1796
    %v1801 = vand.u32 2147483647, %v1791
    %vm1802 = vcmp.eq.f32.partialorder %v1801, 8.507059e+37
    %v1803 = vand.u32 %v1791, 2147483648
    %v1804 = vor.u32 1.1754944e-38, %v1803
    %v1805 = vsel %vm1802, %v1804, %v1800
    %v1806 = vmul.f32 1.0, %v1805
    %v1807 = vmul.f32 %v1806, %v1783
    %v1808 = vtanh.pop %v1780
    %1810 = vrot.lane.b32.xlu0 %v1808, 64
    %v1811 = vpop.permute.xlu0 %1810
    %v1813 = vmul.f32 %v1806, %v1811
    %1815 = vrot.lane.b32.xlu0 %v1813, 32
    %v1816 = vpop.permute.xlu0 %1815
    %v1818 = vadd.f32 %v1807, %v1816
    %v1819 = vmul.f32 %v1818, %v351
    %1821 = vrot.lane.b32.xlu0 %v1819, 64
    %v1822 = vpop.permute.xlu0 %1821
    %v1824 = vadd.f32 %v1780, %v1822
    %v1825 = vxor.u32 %v1824, 2147483648
    %v1826 = vmul.f32 %v1825, 1.442695
    %v1827 = vpow.pop %v1826
    %v1828 = vadd.f32 %v1827, 1.0
    %v1829 = vrcp.pop %v1828
    %v1830 = vmul.f32 %v1828, %v1829
    %v1831 = vsub.f32 1.0, %v1830
    %v1832 = vmul.f32 %v1829, %v1831
    %v1833 = vadd.f32 %v1829, %v1832
    %vm1834 = vweird.f32 %v1828
    %vm1835 = vweird.f32 %v1829
    %vm1836 = vmor %vm1834, %vm1835
    %v1837 = vsel %vm1836, %v1829, %v1833
    %v1838 = vand.u32 2147483647, %v1828
    %vm1839 = vcmp.eq.f32.partialorder %v1838, 8.507059e+37
    %v1840 = vand.u32 %v1828, 2147483648
    %v1841 = vor.u32 1.1754944e-38, %v1840
    %v1842 = vsel %vm1839, %v1841, %v1837
    %v1843 = vmul.f32 1.0, %v1842
    %v1844 = vtanh.pop %v1818
    %1846 = vrot.lane.b32.xlu0 %v1844, 64
    %v1847 = vpop.permute.xlu0 %1846
    %v1849 = vmul.f32 %v1843, %v1847
    %1851 = vrot.lane.b32.xlu0 %v1849, 32
    %v1852 = vpop.permute.xlu0 %1851
    %v1853 = vsel %vm206, %v1852, 0
    %1855 = vmatpush.msra.mxu0 0.0
    %1856 = vmatpush.msra.mxu0 0.0
    %1857 = vmatpush.msra.mxu0 0.0
    %1858 = vmatpush.msra.mxu0 0.0
    %1859 = vmatpush.msra.mxu0 0.0
    %1860 = vmatpush.msra.mxu0 0.0
    %1861 = vmatpush.msra.mxu0 0.0
    %1862 = vmatpush.msra.mxu0 0.0
    %1863 = vmatpush.msra.mxu0 0.0
    %1864 = vmatpush.msra.mxu0 0.0
    %1865 = vmatpush.msra.mxu0 0.0
    %1866 = vmatpush.msra.mxu0 0.0
    %1867 = vmatpush.msra.mxu0 %v60
    %1868 = vmatpush.msra.mxu0 %v59
    %1869 = vmatpush.msra.mxu0 %v58
    %1870 = vmatpush.msra.mxu0 %v57
    %1871 = vmatmul.f32.gmra.mxu0 %v1853
    %v1872 = vpop.f32.mrf.mxu0
    %v1873 = vadd.f32 %v73, %v1872
    %1874 = vdwg.mxu0
    %v1875 = vtanh.pop %v1873
    %1877 = vrot.lane.b32.xlu0 %v1723, 104
    %v1878 = vpop.permute.xlu0 %1877
    %1881 = vrot.lane.b32.xlu0 %v1818, 8
    %v1882 = vpop.permute.xlu0 %1881
    %v1884 = vsel %vm418, %v1875, %v1878
    %v1885 = vsel %vm420, %v1884, %v1882
    %v1887 = vsel %vm155, %v1885, 0
    %1889 = vmatpush.msra.mxu0 0.0
    %1890 = vmatpush.msra.mxu0 0.0
    %1891 = vmatpush.msra.mxu0 0.0
    %1892 = vmatpush.msra.mxu0 0.0
    %1893 = vmatpush.msra.mxu0 0.0
    %1894 = vmatpush.msra.mxu0 0.0
    %1895 = vmatpush.msra.mxu0 0.0
    %1896 = vmatpush.msra.mxu0 %v49
    %1897 = vmatpush.msra.mxu0 %v47
    %1898 = vmatpush.msra.mxu0 %v45
    %1899 = vmatpush.msra.mxu0 %v43
    %1900 = vmatpush.msra.mxu0 %v41
    %1901 = vmatpush.msra.mxu0 %v39
    %1902 = vmatpush.msra.mxu0 %v37
    %1903 = vmatpush.msra.mxu0 %v35
    %1904 = vmatpush.msra.mxu0 %v33
    %1905 = vmatmul.f32.gmra.mxu0 %v1887
    %v1906 = vpop.f32.mrf.mxu0
    %v1907 = vadd.f32 0.0, %v1906
    %1908 = vdwg.mxu0
    %1909 = vmatpush.msra.mxu0 0.0
    %1910 = vmatpush.msra.mxu0 0.0
    %1911 = vmatpush.msra.mxu0 0.0
    %1912 = vmatpush.msra.mxu0 0.0
    %1913 = vmatpush.msra.mxu0 0.0
    %1914 = vmatpush.msra.mxu0 0.0
    %1915 = vmatpush.msra.mxu0 0.0
    %1916 = vmatpush.msra.mxu0 %v50
    %1917 = vmatpush.msra.mxu0 %v48
    %1918 = vmatpush.msra.mxu0 %v46
    %1919 = vmatpush.msra.mxu0 %v44
    %1920 = vmatpush.msra.mxu0 %v42
    %1921 = vmatpush.msra.mxu0 %v40
    %1922 = vmatpush.msra.mxu0 %v38
    %1923 = vmatpush.msra.mxu0 %v36
    %1924 = vmatpush.msra.mxu0 %v34
    %1925 = vmatmul.f32.gmra.mxu0 %v1887
    %v1926 = vpop.f32.mrf.mxu0
    %v1927 = vadd.f32 0.0, %v1926
    %1928 = vdwg.mxu0
    %v1929 = vadd.f32 %v151, %v1907
    %1931 = vrot.lane.b32.xlu0 %v1754, 64
    %v1932 = vpop.permute.xlu0 %1931
    %v1934 = vsel %vm206, %v1757, %v1932
    %v1935 = vmul.f32 %v1934, %v65
    %v1936 = vadd.f32 %v1929, %v1935
    %v1937 = vxor.u32 %v1936, 2147483648
    %v1938 = vmul.f32 %v1937, 1.442695
    %v1939 = vpow.pop %v1938
    %v1940 = vadd.f32 %v1939, 1.0
    %v1941 = vrcp.pop %v1940
    %v1942 = vmul.f32 %v1940, %v1941
    %v1943 = vsub.f32 1.0, %v1942
    %v1944 = vmul.f32 %v1941, %v1943
    %v1945 = vadd.f32 %v1941, %v1944
    %vm1946 = vweird.f32 %v1940
    %vm1947 = vweird.f32 %v1941
    %vm1948 = vmor %vm1946, %vm1947
    %v1949 = vsel %vm1948, %v1941, %v1945
    %v1950 = vand.u32 2147483647, %v1940
    %vm1951 = vcmp.eq.f32.partialorder %v1950, 8.507059e+37
    %v1952 = vand.u32 %v1940, 2147483648
    %v1953 = vor.u32 1.1754944e-38, %v1952
    %v1954 = vsel %vm1951, %v1953, %v1949
    %v1955 = vmul.f32 1.0, %v1954
    %v1956 = vmul.f32 %v1955, %v1932
    %v1957 = vtanh.pop %v1929
    %1959 = vrot.lane.b32.xlu0 %v1957, 64
    %v1960 = vpop.permute.xlu0 %1959
    %v1962 = vmul.f32 %v1955, %v1960
    %1964 = vrot.lane.b32.xlu0 %v1962, 32
    %v1965 = vpop.permute.xlu0 %1964
    %v1967 = vadd.f32 %v1956, %v1965
    %v1968 = vmul.f32 %v1967, %v243
    %1970 = vrot.lane.b32.xlu0 %v1968, 64
    %v1971 = vpop.permute.xlu0 %1970
    %v1973 = vadd.f32 %v1929, %v1971
    %v1974 = vxor.u32 %v1973, 2147483648
    %v1975 = vmul.f32 %v1974, 1.442695
    %v1976 = vpow.pop %v1975
    %v1977 = vadd.f32 %v1976, 1.0
    %v1978 = vrcp.pop %v1977
    %v1979 = vmul.f32 %v1977, %v1978
    %v1980 = vsub.f32 1.0, %v1979
    %v1981 = vmul.f32 %v1978, %v1980
    %v1982 = vadd.f32 %v1978, %v1981
    %vm1983 = vweird.f32 %v1977
    %vm1984 = vweird.f32 %v1978
    %vm1985 = vmor %vm1983, %vm1984
    %v1986 = vsel %vm1985, %v1978, %v1982
    %v1987 = vand.u32 2147483647, %v1977
    %vm1988 = vcmp.eq.f32.partialorder %v1987, 8.507059e+37
    %v1989 = vand.u32 %v1977, 2147483648
    %v1990 = vor.u32 1.1754944e-38, %v1989
    %v1991 = vsel %vm1988, %v1990, %v1986
    %v1992 = vmul.f32 1.0, %v1991
    %v1993 = vtanh.pop %v1967
    %1995 = vrot.lane.b32.xlu0 %v1993, 64
    %v1996 = vpop.permute.xlu0 %1995
    %v1998 = vmul.f32 %v1992, %v1996
    %2000 = vrot.lane.b32.xlu0 %v1998, 32
    %v2001 = vpop.permute.xlu0 %2000
    %v2002 = vsel %vm206, %v2001, 0
    %2004 = vmatpush.msra.mxu0 0.0
    %2005 = vmatpush.msra.mxu0 0.0
    %2006 = vmatpush.msra.mxu0 0.0
    %2007 = vmatpush.msra.mxu0 0.0
    %2008 = vmatpush.msra.mxu0 0.0
    %2009 = vmatpush.msra.mxu0 0.0
    %2010 = vmatpush.msra.mxu0 0.0
    %2011 = vmatpush.msra.mxu0 0.0
    %2012 = vmatpush.msra.mxu0 0.0
    %2013 = vmatpush.msra.mxu0 0.0
    %2014 = vmatpush.msra.mxu0 0.0
    %2015 = vmatpush.msra.mxu0 0.0
    %2016 = vmatpush.msra.mxu0 %v54
    %2017 = vmatpush.msra.mxu0 %v53
    %2018 = vmatpush.msra.mxu0 %v52
    %2019 = vmatpush.msra.mxu0 %v51
    %2020 = vmatmul.f32.gmra.mxu0 %v2002
    %v2021 = vpop.f32.mrf.mxu0
    %v2022 = vadd.f32 %v1927, %v2021
    %2023 = vdwg.mxu0
    %v2024 = vadd.f32 %v2022, %v63
    %2026 = vrot.lane.b32.xlu0 %v1849, 64
    %v2027 = vpop.permute.xlu0 %2026
    %v2029 = vsel %vm206, %v1852, %v2027
    %v2030 = vmul.f32 %v2029, %v69
    %v2031 = vadd.f32 %v2024, %v2030
    %v2032 = vxor.u32 %v2031, 2147483648
    %v2033 = vmul.f32 %v2032, 1.442695
    %v2034 = vpow.pop %v2033
    %v2035 = vadd.f32 %v2034, 1.0
    %v2036 = vrcp.pop %v2035
    %v2037 = vmul.f32 %v2035, %v2036
    %v2038 = vsub.f32 1.0, %v2037
    %v2039 = vmul.f32 %v2036, %v2038
    %v2040 = vadd.f32 %v2036, %v2039
    %vm2041 = vweird.f32 %v2035
    %vm2042 = vweird.f32 %v2036
    %vm2043 = vmor %vm2041, %vm2042
    %v2044 = vsel %vm2043, %v2036, %v2040
    %v2045 = vand.u32 2147483647, %v2035
    %vm2046 = vcmp.eq.f32.partialorder %v2045, 8.507059e+37
    %v2047 = vand.u32 %v2035, 2147483648
    %v2048 = vor.u32 1.1754944e-38, %v2047
    %v2049 = vsel %vm2046, %v2048, %v2044
    %v2050 = vmul.f32 1.0, %v2049
    %v2051 = vmul.f32 %v2050, %v2027
    %v2052 = vtanh.pop %v2024
    %2054 = vrot.lane.b32.xlu0 %v2052, 64
    %v2055 = vpop.permute.xlu0 %2054
    %v2057 = vmul.f32 %v2050, %v2055
    %2059 = vrot.lane.b32.xlu0 %v2057, 32
    %v2060 = vpop.permute.xlu0 %2059
    %v2062 = vadd.f32 %v2051, %v2060
    %v2063 = vmul.f32 %v2062, %v351
    %2065 = vrot.lane.b32.xlu0 %v2063, 64
    %v2066 = vpop.permute.xlu0 %2065
    %v2068 = vadd.f32 %v2024, %v2066
    %v2069 = vxor.u32 %v2068, 2147483648
    %v2070 = vmul.f32 %v2069, 1.442695
    %v2071 = vpow.pop %v2070
    %v2072 = vadd.f32 %v2071, 1.0
    %v2073 = vrcp.pop %v2072
    %v2074 = vmul.f32 %v2072, %v2073
    %v2075 = vsub.f32 1.0, %v2074
    %v2076 = vmul.f32 %v2073, %v2075
    %v2077 = vadd.f32 %v2073, %v2076
    %vm2078 = vweird.f32 %v2072
    %vm2079 = vweird.f32 %v2073
    %vm2080 = vmor %vm2078, %vm2079
    %v2081 = vsel %vm2080, %v2073, %v2077
    %v2082 = vand.u32 2147483647, %v2072
    %vm2083 = vcmp.eq.f32.partialorder %v2082, 8.507059e+37
    %v2084 = vand.u32 %v2072, 2147483648
    %v2085 = vor.u32 1.1754944e-38, %v2084
    %v2086 = vsel %vm2083, %v2085, %v2081
    %v2087 = vmul.f32 1.0, %v2086
    %v2088 = vtanh.pop %v2062
    %2090 = vrot.lane.b32.xlu0 %v2088, 64
    %v2091 = vpop.permute.xlu0 %2090
    %v2093 = vmul.f32 %v2087, %v2091
    %2095 = vrot.lane.b32.xlu0 %v2093, 32
    %v2096 = vpop.permute.xlu0 %2095
    %v2097 = vsel %vm206, %v2096, 0
    %2099 = vmatpush.msra.mxu0 0.0
    %2100 = vmatpush.msra.mxu0 0.0
    %2101 = vmatpush.msra.mxu0 0.0
    %2102 = vmatpush.msra.mxu0 0.0
    %2103 = vmatpush.msra.mxu0 0.0
    %2104 = vmatpush.msra.mxu0 0.0
    %2105 = vmatpush.msra.mxu0 0.0
    %2106 = vmatpush.msra.mxu0 0.0
    %2107 = vmatpush.msra.mxu0 0.0
    %2108 = vmatpush.msra.mxu0 0.0
    %2109 = vmatpush.msra.mxu0 0.0
    %2110 = vmatpush.msra.mxu0 0.0
    %2111 = vmatpush.msra.mxu0 %v60
    %2112 = vmatpush.msra.mxu0 %v59
    %2113 = vmatpush.msra.mxu0 %v58
    %2114 = vmatpush.msra.mxu0 %v57
    %2115 = vmatmul.f32.gmra.mxu0 %v2097
    %v2116 = vpop.f32.mrf.mxu0
    %v2117 = vadd.f32 %v73, %v2116
    %2118 = vdwg.mxu0
    %v2119 = vtanh.pop %v2117
    %2120 = vst.msk [vmem:[%s4] sm:$0xff] %vm418, %v409
    %2121 = vst.msk [vmem:[%s4 + $0x8] sm:$0xff] %vm418, %v655
    %2122 = vst.msk [vmem:[%s4 + $0x10] sm:$0xff] %vm418, %v899
    %2123 = vst.msk [vmem:[%s4 + $0x18] sm:$0xff] %vm418, %v1143
    %2124 = vst.msk [vmem:[%s4 + $0x20] sm:$0xff] %vm418, %v1387
    %2125 = vst.msk [vmem:[%s4 + $0x28] sm:$0xff] %vm418, %v1631
    %2126 = vst.msk [vmem:[%s4 + $0x30] sm:$0xff] %vm418, %v1875
    %2127 = vst.msk [vmem:[%s4 + $0x38] sm:$0xff] %vm418, %v2119
    // Predicated region
    $region22: #{tpu_custom_call.1} parent=1 // pred_check
      _
    $region23: #{tpu_custom_call.1} parent=1 // pred_check_branch
      %2129 = sbr.rel (0) target = $region25
    $region24: #{tpu_custom_call.1} parent=1 // pred_region
      _
    $region25: #{tpu_custom_call.1} parent=1 // pred_fallthru
      _
    // Predicated region
    $region26: #{tpu_custom_call.1} parent=1 // pred_check
      _
    $region27: #{tpu_custom_call.1} parent=1 // pred_check_branch
      %2131 = sbr.rel (0) target = $region29
    $region28: #{tpu_custom_call.1} parent=1 // pred_region
      _
    $region29: #{tpu_custom_call.1} parent=1 // pred_fallthru
      _
    %2132 = vsyncpa [#allocation3], 1

</llo_original>
